<compile_context>
chip_gen: v7x
topology: tpu7x:2x2x1
jax: 0.10.0
libtpu: 0.0.40
codegen_flags: <defaults>
</compile_context>

<pallas_src>
import math

import jax
import jax.numpy as jnp
from jax.experimental import pallas as pl
from jax.experimental.pallas import tpu as pltpu

# Small synthetic shapes consistent with the module's head bookkeeping.
B, S, H = 2, 8, 32
NUM_HEADS = 4
HEAD_DIM = H // NUM_HEADS          # 8
PAST = 8                           # past KV length
KV = PAST + S                      # 16
NUM_LAYERS = 2
FFN = 4 * H
LN_EPS = 1e-5

_GELU_C = 0.7978845608028654       # sqrt(2/pi)

# Fused projection column layout: [FC1 | Q | Q_swapped | K | K_swapped | V].
# (FC1 first so its 128 columns are lane-aligned; swapped columns implement
#  rotate_half via a column permutation baked into the weights.)
W_BIG = FFN + 2 * H + 3 * HEAD_DIM
_OFF_FC1 = 0
_OFF_Q = FFN
_OFF_QSW = FFN + H
_OFF_K = FFN + 2 * H
_OFF_KSW = FFN + 2 * H + HEAD_DIM
_OFF_V = FFN + 2 * H + 2 * HEAD_DIM


def _rot_half(t):
    """Reference-only rotate_half (the kernel folds this into the weights)."""
    half = HEAD_DIM // 2
    return jnp.concatenate([-t[..., half:], t[..., :half]], axis=-1)


def _falcon_stack_kernel(hidden_ref, cos_ref, sin_ref, mask_ref,
                         past_k_ref, past_v_ref,
                         ln_w_ref, ln_b_ref,
                         w_big_ref, w_dense_ref, w_fc2_ref,
                         hid_out_ref, k_out_ref, v_out_ref,
                         h_scratch):
    layer = pl.program_id(1)

    # Load this batch element's hidden state into the resident carry at layer 0.
    @pl.when(layer == 0)
    def _():
        h_scratch[...] = hidden_ref[...]

    x = h_scratch[...]                               # [S, H]

    # ---- input LayerNorm (shared by attention & MLP: Falcon parallel block) ----
    mu = jnp.mean(x, axis=-1, keepdims=True)
    var = jnp.mean(jnp.square(x - mu), axis=-1, keepdims=True)
    ln = (x - mu) * jax.lax.rsqrt(var + LN_EPS)
    ln = ln * ln_w_ref[0] + ln_b_ref[0]              # (1, H) broadcasts over rows

    # ---- ONE fused MXU contraction: FC1 + Q + Q_swapped + K + K_swapped + V ----
    big = jnp.dot(ln.astype(jnp.bfloat16), w_big_ref[0],
                  preferred_element_type=jnp.float32)          # [S, W_BIG] f32
    h4   = big[:, _OFF_FC1:_OFF_Q]                   # [S, FFN]
    q    = big[:, _OFF_Q:_OFF_QSW]                   # [S, H]
    q_sw = big[:, _OFF_QSW:_OFF_K]                   # [S, H]  (per-head half-swap)
    k    = big[:, _OFF_K:_OFF_KSW]                   # [S, D]
    k_sw = big[:, _OFF_KSW:_OFF_V]                   # [S, D]
    v    = big[:, _OFF_V:]                           # [S, D]

    # ---- rotary in the packed layout: sign folded into sin, swap folded into
    #      the fused weight columns -> pure elementwise (no relayouts) ----
    cos_q = cos_ref[...]                             # [S, H] head-tiled
    sin_q = sin_ref[...]                             # [S, H] pre-signed
    q_rot = q * cos_q + q_sw * sin_q
    k_rot = k * cos_q[:, :HEAD_DIM] + k_sw * sin_q[:, :HEAD_DIM]

    # ---- KV cache append (multi-query: single shared K/V head) ----
    k_full = jnp.concatenate([past_k_ref[0, 0], k_rot], axis=0)   # [KV, D]
    v_full = jnp.concatenate([past_v_ref[0, 0], v], axis=0)       # [KV, D]

    # ---- attention: head-blocked dot_generals on lane slices of packed q ----
    scale = 1.0 / math.sqrt(HEAD_DIM)
    mask = mask_ref[...]                             # [S, KV] additive mask
    ctx_heads = []
    for h in range(NUM_HEADS):
        qh = q_rot[:, h * HEAD_DIM:(h + 1) * HEAD_DIM]            # [S, D]
        sc = jax.lax.dot_general(qh, k_full, (((1,), (1,)), ((), ())),
                                 preferred_element_type=jnp.float32)
        sc = sc * scale + mask
        m = jnp.max(sc, axis=-1, keepdims=True)
        e = jnp.exp(sc - m)
        p = e * pl.reciprocal(jnp.sum(e, axis=-1, keepdims=True), approx=True)
        ctx_heads.append(jnp.dot(p, v_full, preferred_element_type=jnp.float32))
    ctx = jnp.concatenate(ctx_heads, axis=-1)                     # [S, H]
    attn_out = jnp.dot(ctx.astype(jnp.bfloat16), w_dense_ref[0],
                       preferred_element_type=jnp.float32)

    # ---- MLP branch (parallel with attention on the same LN output) ----
    # TODO(synk): PyTorch F.gelu is exact (erf); tanh approximation kept for Mosaic-safe lowering.
    g = 0.5 * h4 * (1.0 + jnp.tanh(_GELU_C * (h4 + 0.044715 * h4 * h4 * h4)))
    mlp_out = jnp.dot(g.astype(jnp.bfloat16), w_fc2_ref[0],
                      preferred_element_type=jnp.float32)

    # ---- Falcon-7B parallel residual; carry stays resident in VMEM ----
    new_h = x + attn_out + mlp_out
    h_scratch[...] = new_h

    # ---- per-layer KV cache outputs stored directly (no lane densification) ----
    k_out_ref[0, 0] = k_full
    v_out_ref[0, 0] = v_full

    @pl.when(layer == pl.num_programs(1) - 1)
    def _():
        hid_out_ref[...] = new_h


def sequential_caller(hidden_states, cos, sin, attention_mask, layer_params,
                      *past_key_values):
    """Mirrors SequentialCaller.forward: chain blocks, return (hidden, k_0, v_0, ...)."""
    # TODO(synk): the layer_past=None (empty cache) path is not implemented; a
    #             KV cache of length PAST is always provided here.
    num_layers = len(layer_params)
    D = HEAD_DIM

    # Fused per-layer weight [FC1 | Q | Q_swapped | K | K_swapped | V], bf16 for MXU.
    perm_q = jnp.array([h * D + ((d + D // 2) % D)
                        for h in range(NUM_HEADS) for d in range(D)])
    perm_k = jnp.array([(d + D // 2) % D for d in range(D)])
    w_big_list = []
    for p in layer_params:
        wq = p["w_qkv"][:, :H]
        wk = p["w_qkv"][:, H:H + D]
        wv = p["w_qkv"][:, H + D:]
        w_big_list.append(jnp.concatenate(
            [p["w_fc1"], wq, wq[:, perm_q], wk, wk[:, perm_k], wv], axis=1))
    w_big = jnp.stack(w_big_list).astype(jnp.bfloat16)             # [L, H, W_BIG]
    w_dense = jnp.stack([p["w_dense"] for p in layer_params]).astype(jnp.bfloat16)
    w_fc2 = jnp.stack([p["w_fc2"] for p in layer_params]).astype(jnp.bfloat16)
    ln_w = jnp.stack([p["ln_w"] for p in layer_params])            # [L, 1, H]
    ln_b = jnp.stack([p["ln_b"] for p in layer_params])            # [L, 1, H]
    past_k = jnp.stack(past_key_values[0::2])                      # [L, B, PAST, D]
    past_v = jnp.stack(past_key_values[1::2])                      # [L, B, PAST, D]

    # Head-tiled rotary tables; rotate_half sign folded into the sin table.
    cos_pack = jnp.tile(cos, (1, NUM_HEADS))                       # [S, H]
    sin_signed = jnp.concatenate([-sin[:, :D // 2], sin[:, D // 2:]], axis=-1)
    sin_pack = jnp.tile(sin_signed, (1, NUM_HEADS))                # [S, H]

    # TODO(synk): attention_mask assumed identical across batch (causal + cached
    #             prefix); per-batch padding masks would need a [B, ...] spec.
    mask2d = attention_mask[0] if attention_mask.ndim == 3 else attention_mask

    hidden2d = hidden_states.reshape(B * S, H)

    rep2 = lambda b, l: (0, 0)
    batch2 = lambda b, l: (b, 0)
    layer3 = lambda b, l: (l, 0, 0)
    layer_batch4 = lambda b, l: (l, b, 0, 0)

    in_specs = [
        pl.BlockSpec((S, H), batch2),                              # hidden (layer 0)
        pl.BlockSpec((S, H), rep2),                                # cos (head-tiled)
        pl.BlockSpec((S, H), rep2),                                # sin (pre-signed)
        pl.BlockSpec((S, KV), rep2),                               # additive mask
        pl.BlockSpec((1, 1, PAST, D), layer_batch4),               # past K
        pl.BlockSpec((1, 1, PAST, D), layer_batch4),               # past V
        pl.BlockSpec((1, 1, H), layer3),                           # ln weight
        pl.BlockSpec((1, 1, H), layer3),                           # ln bias
        pl.BlockSpec((1, H, W_BIG), layer3),                       # fused W (bf16)
        pl.BlockSpec((1, H, H), layer3),                           # W_dense (bf16)
        pl.BlockSpec((1, FFN, H), layer3),                         # W_fc2 (bf16)
    ]
    out_specs = (
        pl.BlockSpec((S, H), batch2),                              # hidden out
        pl.BlockSpec((1, 1, KV, D), layer_batch4),                 # K cache
        pl.BlockSpec((1, 1, KV, D), layer_batch4),                 # V cache
    )
    out_shape = (
        jax.ShapeDtypeStruct((B * S, H), jnp.float32),
        jax.ShapeDtypeStruct((num_layers, B, KV, D), jnp.float32),
        jax.ShapeDtypeStruct((num_layers, B, KV, D), jnp.float32),
    )

    hid_flat, k_out, v_out = pl.pallas_call(
        _falcon_stack_kernel,
        out_shape=out_shape,
        grid=(B, num_layers),
        in_specs=in_specs,
        out_specs=out_specs,
        scratch_shapes=[pltpu.VMEM((S, H), jnp.float32)],
        compiler_params=pltpu.CompilerParams(
            # batch elements are independent (v7x: split across the 2 TCs);
            # layers are sequentially dependent -> innermost, "arbitrary".
            dimension_semantics=("parallel", "arbitrary"),
            vmem_limit_bytes=64 * 1024 * 1024),
    )(hidden2d, cos_pack, sin_pack, mask2d, past_k, past_v,
      ln_w, ln_b, w_big, w_dense, w_fc2)

    hidden_out = hid_flat.reshape(B, S, H)
    result = [hidden_out]
    for i in range(num_layers):
        result.extend([k_out[i], v_out[i]])
    return tuple(result)


def make_layer_params(key):
    ks = jax.random.split(key, 6)
    return {
        "ln_w": 1.0 + 0.02 * jax.random.normal(ks[0], (1, H), jnp.float32),
        "ln_b": 0.02 * jax.random.normal(ks[1], (1, H), jnp.float32),
        "w_qkv": 0.05 * jax.random.normal(ks[2], (H, H + 2 * HEAD_DIM), jnp.float32),
        "w_dense": 0.05 * jax.random.normal(ks[3], (H, H), jnp.float32),
        "w_fc1": 0.05 * jax.random.normal(ks[4], (H, FFN), jnp.float32),
        "w_fc2": 0.05 * jax.random.normal(ks[5], (FFN, H), jnp.float32),
    }


def reference_forward(hidden, cos, sin, mask2d, layer_params, past_key_values):
    """Plain-JAX per-layer implementation of the same Falcon block math (f32)."""
    x = hidden
    outs = []
    for i, p in enumerate(layer_params):
        past_k = past_key_values[2 * i]
        past_v = past_key_values[2 * i + 1]
        mu = jnp.mean(x, axis=-1, keepdims=True)
        var = jnp.mean(jnp.square(x - mu), axis=-1, keepdims=True)
        ln = (x - mu) * jax.lax.rsqrt(var + LN_EPS) * p["ln_w"] + p["ln_b"]
        qkv = jnp.einsum('bsh,hc->bsc', ln, p["w_qkv"])
        q = qkv[..., :H]
        k = qkv[..., H:H + HEAD_DIM]
        v = qkv[..., H + HEAD_DIM:]
        k_rot = k * cos + _rot_half(k) * sin
        k_full = jnp.concatenate([past_k, k_rot], axis=1)
        v_full = jnp.concatenate([past_v, v], axis=1)
        heads = []
        for h in range(NUM_HEADS):
            qh = q[..., h * HEAD_DIM:(h + 1) * HEAD_DIM]
            qh = qh * cos + _rot_half(qh) * sin
            sc = jnp.einsum('bsd,bkd->bsk', qh, k_full) / math.sqrt(HEAD_DIM) + mask2d
            pr = jax.nn.softmax(sc, axis=-1)
            heads.append(jnp.einsum('bsk,bkd->bsd', pr, v_full))
        ctx = jnp.concatenate(heads, axis=-1)
        attn_out = jnp.einsum('bsh,hd->bsd', ctx, p["w_dense"])
        h4 = jnp.einsum('bsh,hf->bsf', ln, p["w_fc1"])
        g = 0.5 * h4 * (1.0 + jnp.tanh(_GELU_C * (h4 + 0.044715 * h4 * h4 * h4)))
        mlp_out = jnp.einsum('bsf,fh->bsh', g, p["w_fc2"])
        x = x + attn_out + mlp_out
        outs.extend([k_full, v_full])
    return tuple([x] + outs)


if __name__ == "__main__":
    root = jax.random.PRNGKey(0)
    k_hidden, k_params, k_past = jax.random.split(root, 3)

    hidden = jax.random.normal(k_hidden, (B, S, H), jnp.float32)

    # Rotary tables for absolute positions PAST .. PAST + S - 1.
    inv_freq = 1.0 / (10000.0 ** (jnp.arange(0, HEAD_DIM, 2, dtype=jnp.float32) / HEAD_DIM))
    pos = jnp.arange(PAST, PAST + S, dtype=jnp.float32)
    freqs = pos[:, None] * inv_freq[None, :]                 # [S, HEAD_DIM//2]
    emb = jnp.concatenate([freqs, freqs], axis=-1)           # [S, HEAD_DIM]
    cos = jnp.cos(emb)
    sin = jnp.sin(emb)

    # Causal additive attention mask over past + current keys (batch-shared).
    q_pos = PAST + jnp.arange(S)[:, None]
    k_pos = jnp.arange(KV)[None, :]
    mask = jnp.where(k_pos <= q_pos, 0.0, -1e9).astype(jnp.float32)   # [S, KV]

    layer_params = [make_layer_params(k)
                    for k in jax.random.split(k_params, NUM_LAYERS)]

    past_kv = []
    for k in jax.random.split(k_past, 2 * NUM_LAYERS):
        past_kv.append(0.1 * jax.random.normal(k, (B, PAST, HEAD_DIM), jnp.float32))

    outputs = sequential_caller(hidden, cos, sin, mask, layer_params, *past_kv)
    outputs = jax.block_until_ready(outputs)

    assert len(outputs) == 1 + 2 * NUM_LAYERS
    assert outputs[0].shape == (B, S, H)
    assert all(o.shape == (B, KV, HEAD_DIM) for o in outputs[1:])
    assert all(bool(jnp.all(jnp.isfinite(o))) for o in outputs)

    # Cross-check against a plain-JAX f32 reference of the same block math.
    with jax.default_matmul_precision("highest"):
        ref = reference_forward(hidden, cos, sin, mask, layer_params, past_kv)
    max_err = max(float(jnp.max(jnp.abs(a - b))) for a, b in zip(outputs, ref))
    assert max_err < 2e-2, f"mismatch vs reference: {max_err}"

    print("KERNEL_OK")
</pallas_src>

<mosaic_0001>
module attributes {stable_mosaic.version = 11 : i64} {
  func.func @_falcon_stack_kernel(%arg0: i32, %arg1: i32, %arg2: memref<8x32xf32, #tpu.memory_space<vmem>>, %arg3: memref<8x32xf32, #tpu.memory_space<vmem>>, %arg4: memref<8x32xf32, #tpu.memory_space<vmem>>, %arg5: memref<8x16xf32, #tpu.memory_space<vmem>>, %arg6: memref<1x1x8x8xf32, #tpu.memory_space<vmem>>, %arg7: memref<1x1x8x8xf32, #tpu.memory_space<vmem>>, %arg8: memref<1x1x32xf32, #tpu.memory_space<vmem>>, %arg9: memref<1x1x32xf32, #tpu.memory_space<vmem>>, %arg10: memref<1x32x216xbf16, #tpu.memory_space<vmem>>, %arg11: memref<1x32x32xbf16, #tpu.memory_space<vmem>>, %arg12: memref<1x128x32xbf16, #tpu.memory_space<vmem>>, %arg13: memref<8x32xf32, #tpu.memory_space<vmem>>, %arg14: memref<1x1x16x8xf32, #tpu.memory_space<vmem>>, %arg15: memref<1x1x16x8xf32, #tpu.memory_space<vmem>>, %arg16: memref<8x32xf32, #tpu.memory_space<vmem>>) attributes {dimension_semantics = [#tpu.dimension_semantics<parallel>, #tpu.dimension_semantics<arbitrary>], iteration_bounds = array<i64: 2, 2>, scalar_prefetch = 0 : i64, scratch_operands = 1 : i64, tpu.core_type = #tpu.core_type<tc>, window_params = [{transform_indices = @transform_0, window_bounds = array<i64: 8, 32>}, {pipeline_mode = #tpu.pipeline_mode<synchronous>, transform_indices = @transform_1, window_bounds = array<i64: 8, 32>}, {pipeline_mode = #tpu.pipeline_mode<synchronous>, transform_indices = @transform_2, window_bounds = array<i64: 8, 32>}, {pipeline_mode = #tpu.pipeline_mode<synchronous>, transform_indices = @transform_3, window_bounds = array<i64: 8, 16>}, {transform_indices = @transform_4, window_bounds = array<i64: 1, 1, 8, 8>}, {transform_indices = @transform_5, window_bounds = array<i64: 1, 1, 8, 8>}, {transform_indices = @transform_6, window_bounds = array<i64: 1, 1, 32>}, {transform_indices = @transform_7, window_bounds = array<i64: 1, 1, 32>}, {transform_indices = @transform_8, window_bounds = array<i64: 1, 32, 216>}, {transform_indices = @transform_9, window_bounds = array<i64: 1, 32, 32>}, {transform_indices = @transform_10, window_bounds = array<i64: 1, 128, 32>}, {transform_indices = @transform_11, window_bounds = array<i64: 8, 32>}, {transform_indices = @transform_12, window_bounds = array<i64: 1, 1, 16, 8>}, {transform_indices = @transform_13, window_bounds = array<i64: 1, 1, 16, 8>}]} {
    %c0_i32 = arith.constant 0 : i32
    %0 = arith.cmpi eq, %arg1, %c0_i32 : i32
    %1 = arith.extui %0 : i1 to i32
    %c0_i32_0 = arith.constant 0 : i32
    %2 = arith.cmpi ne, %1, %c0_i32_0 : i32
    scf.if %2 {
      %c0_73 = arith.constant 0 : index
      %c0_74 = arith.constant 0 : index
      %155 = vector.load %arg2[%c0_73, %c0_74] : memref<8x32xf32, #tpu.memory_space<vmem>>, vector<8x32xf32>
      %c0_75 = arith.constant 0 : index
      %c0_76 = arith.constant 0 : index
      %156 = vector.load %arg16[%c0_75, %c0_76] : memref<8x32xf32, #tpu.memory_space<vmem>>, vector<8x32xf32>
      tpu.vector_store %arg16[%c0_75, %c0_76], %155 {strides = array<i32>} : memref<8x32xf32, #tpu.memory_space<vmem>>, vector<8x32xf32>,
    } else {
    }
    %c0 = arith.constant 0 : index
    %c0_1 = arith.constant 0 : index
    %3 = vector.load %arg16[%c0, %c0_1] : memref<8x32xf32, #tpu.memory_space<vmem>>, vector<8x32xf32>
    %cst = arith.constant dense<0.000000e+00> : vector<8xf32>
    %4 = vector.multi_reduction <add>, %3, %cst [1] : vector<8x32xf32> to vector<8xf32>
    %5 = vector.shape_cast %4 : vector<8xf32> to vector<8x1xf32>
    %cst_2 = arith.constant 3.200000e+01 : f32
    %6 = vector.broadcast %cst_2 : f32 to vector<8x1xf32>
    %7 = arith.divf %5, %6 : vector<8x1xf32>
    %8 = vector.broadcast %7 : vector<8x1xf32> to vector<8x32xf32>
    %9 = arith.subf %3, %8 : vector<8x32xf32>
    %10 = arith.mulf %9, %9 : vector<8x32xf32>
    %cst_3 = arith.constant dense<0.000000e+00> : vector<8xf32>
    %11 = vector.multi_reduction <add>, %10, %cst_3 [1] : vector<8x32xf32> to vector<8xf32>
    %12 = vector.shape_cast %11 : vector<8xf32> to vector<8x1xf32>
    %cst_4 = arith.constant 3.200000e+01 : f32
    %13 = vector.broadcast %cst_4 : f32 to vector<8x1xf32>
    %14 = arith.divf %12, %13 : vector<8x1xf32>
    %15 = vector.broadcast %7 : vector<8x1xf32> to vector<8x32xf32>
    %16 = arith.subf %3, %15 : vector<8x32xf32>
    %cst_5 = arith.constant 9.99999974E-6 : f32
    %17 = vector.broadcast %cst_5 : f32 to vector<8x1xf32>
    %18 = arith.addf %14, %17 : vector<8x1xf32>
    %19 = math.rsqrt %18 : vector<8x1xf32>
    %20 = vector.broadcast %19 : vector<8x1xf32> to vector<8x32xf32>
    %21 = arith.mulf %16, %20 : vector<8x32xf32>
    %c0_6 = arith.constant 0 : index
    %c0_7 = arith.constant 0 : index
    %c0_8 = arith.constant 0 : index
    %22 = vector.load %arg8[%c0_6, %c0_7, %c0_8] : memref<1x1x32xf32, #tpu.memory_space<vmem>>, vector<1x1x32xf32>
    %23 = vector.shape_cast %22 : vector<1x1x32xf32> to vector<1x32xf32>
    %24 = vector.broadcast %23 : vector<1x32xf32> to vector<8x32xf32>
    %25 = arith.mulf %21, %24 : vector<8x32xf32>
    %c0_9 = arith.constant 0 : index
    %c0_10 = arith.constant 0 : index
    %c0_11 = arith.constant 0 : index
    %26 = vector.load %arg9[%c0_9, %c0_10, %c0_11] : memref<1x1x32xf32, #tpu.memory_space<vmem>>, vector<1x1x32xf32>
    %27 = vector.shape_cast %26 : vector<1x1x32xf32> to vector<1x32xf32>
    %28 = vector.broadcast %27 : vector<1x32xf32> to vector<8x32xf32>
    %29 = arith.addf %25, %28 : vector<8x32xf32>
    %30 = arith.truncf %29 : vector<8x32xf32> to vector<8x32xbf16>
    %c0_12 = arith.constant 0 : index
    %c0_13 = arith.constant 0 : index
    %c0_14 = arith.constant 0 : index
    %31 = vector.load %arg10[%c0_12, %c0_13, %c0_14] : memref<1x32x216xbf16, #tpu.memory_space<vmem>>, vector<1x32x216xbf16>
    %32 = vector.shape_cast %31 : vector<1x32x216xbf16> to vector<32x216xbf16>
    %cst_15 = arith.constant dense<0.000000e+00> : vector<8x216xf32>
    %33 = tpu.matmul %30, %32, %cst_15 {dimension_numbers = #tpu.dot_dimension_numbers<[1], [0], [0], [1], [0, 0, 1, 1], [], []>} : vector<8x32xbf16>, vector<32x216xbf16>, vector<8x216xf32> -> vector<8x216xf32>
    %34 = vector.extract_strided_slice %33 {offsets = [0, 0], sizes = [8, 128], strides = [1, 1]} : vector<8x216xf32> to vector<8x128xf32>
    %35 = vector.extract_strided_slice %33 {offsets = [0, 128], sizes = [8, 32], strides = [1, 1]} : vector<8x216xf32> to vector<8x32xf32>
    %36 = vector.extract_strided_slice %33 {offsets = [0, 160], sizes = [8, 32], strides = [1, 1]} : vector<8x216xf32> to vector<8x32xf32>
    %37 = vector.extract_strided_slice %33 {offsets = [0, 192], sizes = [8, 8], strides = [1, 1]} : vector<8x216xf32> to vector<8x8xf32>
    %38 = vector.extract_strided_slice %33 {offsets = [0, 200], sizes = [8, 8], strides = [1, 1]} : vector<8x216xf32> to vector<8x8xf32>
    %39 = vector.extract_strided_slice %33 {offsets = [0, 208], sizes = [8, 8], strides = [1, 1]} : vector<8x216xf32> to vector<8x8xf32>
    %c0_16 = arith.constant 0 : index
    %c0_17 = arith.constant 0 : index
    %40 = vector.load %arg3[%c0_16, %c0_17] : memref<8x32xf32, #tpu.memory_space<vmem>>, vector<8x32xf32>
    %c0_18 = arith.constant 0 : index
    %c0_19 = arith.constant 0 : index
    %41 = vector.load %arg4[%c0_18, %c0_19] : memref<8x32xf32, #tpu.memory_space<vmem>>, vector<8x32xf32>
    %42 = arith.mulf %35, %40 : vector<8x32xf32>
    %43 = arith.mulf %36, %41 : vector<8x32xf32>
    %44 = arith.addf %42, %43 : vector<8x32xf32>
    %45 = vector.extract_strided_slice %40 {offsets = [0, 0], sizes = [8, 8], strides = [1, 1]} : vector<8x32xf32> to vector<8x8xf32>
    %46 = arith.mulf %37, %45 : vector<8x8xf32>
    %47 = vector.extract_strided_slice %41 {offsets = [0, 0], sizes = [8, 8], strides = [1, 1]} : vector<8x32xf32> to vector<8x8xf32>
    %48 = arith.mulf %38, %47 : vector<8x8xf32>
    %49 = arith.addf %46, %48 : vector<8x8xf32>
    %c0_20 = arith.constant 0 : index
    %c0_21 = arith.constant 0 : index
    %c0_22 = arith.constant 0 : index
    %c0_23 = arith.constant 0 : index
    %50 = vector.load %arg6[%c0_20, %c0_21, %c0_22, %c0_23] : memref<1x1x8x8xf32, #tpu.memory_space<vmem>>, vector<1x1x8x8xf32>
    %51 = vector.shape_cast %50 : vector<1x1x8x8xf32> to vector<8x8xf32>
    %52 = tpu.concatenate %51, %49 in 0 : vector<8x8xf32>, vector<8x8xf32> -> vector<16x8xf32>
    %c0_24 = arith.constant 0 : index
    %c0_25 = arith.constant 0 : index
    %c0_26 = arith.constant 0 : index
    %c0_27 = arith.constant 0 : index
    %53 = vector.load %arg7[%c0_24, %c0_25, %c0_26, %c0_27] : memref<1x1x8x8xf32, #tpu.memory_space<vmem>>, vector<1x1x8x8xf32>
    %54 = vector.shape_cast %53 : vector<1x1x8x8xf32> to vector<8x8xf32>
    %55 = tpu.concatenate %54, %39 in 0 : vector<8x8xf32>, vector<8x8xf32> -> vector<16x8xf32>
    %c0_28 = arith.constant 0 : index
    %c0_29 = arith.constant 0 : index
    %56 = vector.load %arg5[%c0_28, %c0_29] : memref<8x16xf32, #tpu.memory_space<vmem>>, vector<8x16xf32>
    %57 = vector.extract_strided_slice %44 {offsets = [0, 0], sizes = [8, 8], strides = [1, 1]} : vector<8x32xf32> to vector<8x8xf32>
    %cst_30 = arith.constant dense<0.000000e+00> : vector<8x16xf32>
    %58 = tpu.matmul %57, %52, %cst_30 {dimension_numbers = #tpu.dot_dimension_numbers<[1], [1], [0], [0], [0, 0, 1, 0], [], []>} : vector<8x8xf32>, vector<16x8xf32>, vector<8x16xf32> -> vector<8x16xf32>
    %cst_31 = arith.constant 0.353553385 : f32
    %59 = vector.broadcast %cst_31 : f32 to vector<8x16xf32>
    %60 = arith.mulf %58, %59 : vector<8x16xf32>
    %61 = arith.addf %60, %56 : vector<8x16xf32>
    %cst_32 = arith.constant dense<0xFF800000> : vector<8xf32>
    %62 = vector.multi_reduction <maximumf>, %61, %cst_32 [1] : vector<8x16xf32> to vector<8xf32>
    %63 = vector.shape_cast %62 : vector<8xf32> to vector<8x1xf32>
    %64 = vector.broadcast %63 : vector<8x1xf32> to vector<8x16xf32>
    %65 = arith.subf %61, %64 : vector<8x16xf32>
    %66 = math.exp %65 : vector<8x16xf32>
    %cst_33 = arith.constant dense<0.000000e+00> : vector<8xf32>
    %67 = vector.multi_reduction <add>, %66, %cst_33 [1] : vector<8x16xf32> to vector<8xf32>
    %68 = vector.shape_cast %67 : vector<8xf32> to vector<8x1xf32>
    %69 = tpu.reciprocal %68 {approx = true} : vector<8x1xf32> -> vector<8x1xf32>
    %70 = vector.broadcast %69 : vector<8x1xf32> to vector<8x16xf32>
    %71 = arith.mulf %66, %70 : vector<8x16xf32>
    %cst_34 = arith.constant dense<0.000000e+00> : vector<8x8xf32>
    %72 = tpu.matmul %71, %55, %cst_34 {dimension_numbers = #tpu.dot_dimension_numbers<[1], [0], [0], [1], [0, 0, 1, 1], [], []>} : vector<8x16xf32>, vector<16x8xf32>, vector<8x8xf32> -> vector<8x8xf32>
    %73 = vector.extract_strided_slice %44 {offsets = [0, 8], sizes = [8, 8], strides = [1, 1]} : vector<8x32xf32> to vector<8x8xf32>
    %cst_35 = arith.constant dense<0.000000e+00> : vector<8x16xf32>
    %74 = tpu.matmul %73, %52, %cst_35 {dimension_numbers = #tpu.dot_dimension_numbers<[1], [1], [0], [0], [0, 0, 1, 0], [], []>} : vector<8x8xf32>, vector<16x8xf32>, vector<8x16xf32> -> vector<8x16xf32>
    %cst_36 = arith.constant 0.353553385 : f32
    %75 = vector.broadcast %cst_36 : f32 to vector<8x16xf32>
    %76 = arith.mulf %74, %75 : vector<8x16xf32>
    %77 = arith.addf %76, %56 : vector<8x16xf32>
    %cst_37 = arith.constant dense<0xFF800000> : vector<8xf32>
    %78 = vector.multi_reduction <maximumf>, %77, %cst_37 [1] : vector<8x16xf32> to vector<8xf32>
    %79 = vector.shape_cast %78 : vector<8xf32> to vector<8x1xf32>
    %80 = vector.broadcast %79 : vector<8x1xf32> to vector<8x16xf32>
    %81 = arith.subf %77, %80 : vector<8x16xf32>
    %82 = math.exp %81 : vector<8x16xf32>
    %cst_38 = arith.constant dense<0.000000e+00> : vector<8xf32>
    %83 = vector.multi_reduction <add>, %82, %cst_38 [1] : vector<8x16xf32> to vector<8xf32>
    %84 = vector.shape_cast %83 : vector<8xf32> to vector<8x1xf32>
    %85 = tpu.reciprocal %84 {approx = true} : vector<8x1xf32> -> vector<8x1xf32>
    %86 = vector.broadcast %85 : vector<8x1xf32> to vector<8x16xf32>
    %87 = arith.mulf %82, %86 : vector<8x16xf32>
    %cst_39 = arith.constant dense<0.000000e+00> : vector<8x8xf32>
    %88 = tpu.matmul %87, %55, %cst_39 {dimension_numbers = #tpu.dot_dimension_numbers<[1], [0], [0], [1], [0, 0, 1, 1], [], []>} : vector<8x16xf32>, vector<16x8xf32>, vector<8x8xf32> -> vector<8x8xf32>
    %89 = vector.extract_strided_slice %44 {offsets = [0, 16], sizes = [8, 8], strides = [1, 1]} : vector<8x32xf32> to vector<8x8xf32>
    %cst_40 = arith.constant dense<0.000000e+00> : vector<8x16xf32>
    %90 = tpu.matmul %89, %52, %cst_40 {dimension_numbers = #tpu.dot_dimension_numbers<[1], [1], [0], [0], [0, 0, 1, 0], [], []>} : vector<8x8xf32>, vector<16x8xf32>, vector<8x16xf32> -> vector<8x16xf32>
    %cst_41 = arith.constant 0.353553385 : f32
    %91 = vector.broadcast %cst_41 : f32 to vector<8x16xf32>
    %92 = arith.mulf %90, %91 : vector<8x16xf32>
    %93 = arith.addf %92, %56 : vector<8x16xf32>
    %cst_42 = arith.constant dense<0xFF800000> : vector<8xf32>
    %94 = vector.multi_reduction <maximumf>, %93, %cst_42 [1] : vector<8x16xf32> to vector<8xf32>
    %95 = vector.shape_cast %94 : vector<8xf32> to vector<8x1xf32>
    %96 = vector.broadcast %95 : vector<8x1xf32> to vector<8x16xf32>
    %97 = arith.subf %93, %96 : vector<8x16xf32>
    %98 = math.exp %97 : vector<8x16xf32>
    %cst_43 = arith.constant dense<0.000000e+00> : vector<8xf32>
    %99 = vector.multi_reduction <add>, %98, %cst_43 [1] : vector<8x16xf32> to vector<8xf32>
    %100 = vector.shape_cast %99 : vector<8xf32> to vector<8x1xf32>
    %101 = tpu.reciprocal %100 {approx = true} : vector<8x1xf32> -> vector<8x1xf32>
    %102 = vector.broadcast %101 : vector<8x1xf32> to vector<8x16xf32>
    %103 = arith.mulf %98, %102 : vector<8x16xf32>
    %cst_44 = arith.constant dense<0.000000e+00> : vector<8x8xf32>
    %104 = tpu.matmul %103, %55, %cst_44 {dimension_numbers = #tpu.dot_dimension_numbers<[1], [0], [0], [1], [0, 0, 1, 1], [], []>} : vector<8x16xf32>, vector<16x8xf32>, vector<8x8xf32> -> vector<8x8xf32>
    %105 = vector.extract_strided_slice %44 {offsets = [0, 24], sizes = [8, 8], strides = [1, 1]} : vector<8x32xf32> to vector<8x8xf32>
    %cst_45 = arith.constant dense<0.000000e+00> : vector<8x16xf32>
    %106 = tpu.matmul %105, %52, %cst_45 {dimension_numbers = #tpu.dot_dimension_numbers<[1], [1], [0], [0], [0, 0, 1, 0], [], []>} : vector<8x8xf32>, vector<16x8xf32>, vector<8x16xf32> -> vector<8x16xf32>
    %cst_46 = arith.constant 0.353553385 : f32
    %107 = vector.broadcast %cst_46 : f32 to vector<8x16xf32>
    %108 = arith.mulf %106, %107 : vector<8x16xf32>
    %109 = arith.addf %108, %56 : vector<8x16xf32>
    %cst_47 = arith.constant dense<0xFF800000> : vector<8xf32>
    %110 = vector.multi_reduction <maximumf>, %109, %cst_47 [1] : vector<8x16xf32> to vector<8xf32>
    %111 = vector.shape_cast %110 : vector<8xf32> to vector<8x1xf32>
    %112 = vector.broadcast %111 : vector<8x1xf32> to vector<8x16xf32>
    %113 = arith.subf %109, %112 : vector<8x16xf32>
    %114 = math.exp %113 : vector<8x16xf32>
    %cst_48 = arith.constant dense<0.000000e+00> : vector<8xf32>
    %115 = vector.multi_reduction <add>, %114, %cst_48 [1] : vector<8x16xf32> to vector<8xf32>
    %116 = vector.shape_cast %115 : vector<8xf32> to vector<8x1xf32>
    %117 = tpu.reciprocal %116 {approx = true} : vector<8x1xf32> -> vector<8x1xf32>
    %118 = vector.broadcast %117 : vector<8x1xf32> to vector<8x16xf32>
    %119 = arith.mulf %114, %118 : vector<8x16xf32>
    %cst_49 = arith.constant dense<0.000000e+00> : vector<8x8xf32>
    %120 = tpu.matmul %119, %55, %cst_49 {dimension_numbers = #tpu.dot_dimension_numbers<[1], [0], [0], [1], [0, 0, 1, 1], [], []>} : vector<8x16xf32>, vector<16x8xf32>, vector<8x8xf32> -> vector<8x8xf32>
    %121 = tpu.concatenate %72, %88, %104, %120 in 1 : vector<8x8xf32>, vector<8x8xf32>, vector<8x8xf32>, vector<8x8xf32> -> vector<8x32xf32>
    %122 = arith.truncf %121 : vector<8x32xf32> to vector<8x32xbf16>
    %c0_50 = arith.constant 0 : index
    %c0_51 = arith.constant 0 : index
    %c0_52 = arith.constant 0 : index
    %123 = vector.load %arg11[%c0_50, %c0_51, %c0_52] : memref<1x32x32xbf16, #tpu.memory_space<vmem>>, vector<1x32x32xbf16>
    %124 = vector.shape_cast %123 : vector<1x32x32xbf16> to vector<32x32xbf16>
    %cst_53 = arith.constant dense<0.000000e+00> : vector<8x32xf32>
    %125 = tpu.matmul %122, %124, %cst_53 {dimension_numbers = #tpu.dot_dimension_numbers<[1], [0], [0], [1], [0, 0, 1, 1], [], []>} : vector<8x32xbf16>, vector<32x32xbf16>, vector<8x32xf32> -> vector<8x32xf32>
    %cst_54 = arith.constant 5.000000e-01 : f32
    %126 = vector.broadcast %cst_54 : f32 to vector<8x128xf32>
    %127 = arith.mulf %126, %34 : vector<8x128xf32>
    %cst_55 = arith.constant 4.471500e-02 : f32
    %128 = vector.broadcast %cst_55 : f32 to vector<8x128xf32>
    %129 = arith.mulf %128, %34 : vector<8x128xf32>
    %130 = arith.mulf %129, %34 : vector<8x128xf32>
    %131 = arith.mulf %130, %34 : vector<8x128xf32>
    %132 = arith.addf %34, %131 : vector<8x128xf32>
    %cst_56 = arith.constant 0.797884583 : f32
    %133 = vector.broadcast %cst_56 : f32 to vector<8x128xf32>
    %134 = arith.mulf %133, %132 : vector<8x128xf32>
    %135 = math.tanh %134 : vector<8x128xf32>
    %cst_57 = arith.constant 1.000000e+00 : f32
    %136 = vector.broadcast %cst_57 : f32 to vector<8x128xf32>
    %137 = arith.addf %136, %135 : vector<8x128xf32>
    %138 = arith.mulf %127, %137 : vector<8x128xf32>
    %139 = arith.truncf %138 : vector<8x128xf32> to vector<8x128xbf16>
    %c0_58 = arith.constant 0 : index
    %c0_59 = arith.constant 0 : index
    %c0_60 = arith.constant 0 : index
    %140 = vector.load %arg12[%c0_58, %c0_59, %c0_60] : memref<1x128x32xbf16, #tpu.memory_space<vmem>>, vector<1x128x32xbf16>
    %141 = vector.shape_cast %140 : vector<1x128x32xbf16> to vector<128x32xbf16>
    %cst_61 = arith.constant dense<0.000000e+00> : vector<8x32xf32>
    %142 = tpu.matmul %139, %141, %cst_61 {dimension_numbers = #tpu.dot_dimension_numbers<[1], [0], [0], [1], [0, 0, 1, 1], [], []>} : vector<8x128xbf16>, vector<128x32xbf16>, vector<8x32xf32> -> vector<8x32xf32>
    %143 = arith.addf %3, %125 : vector<8x32xf32>
    %144 = arith.addf %143, %142 : vector<8x32xf32>
    %c0_62 = arith.constant 0 : index
    %c0_63 = arith.constant 0 : index
    %145 = vector.load %arg16[%c0_62, %c0_63] : memref<8x32xf32, #tpu.memory_space<vmem>>, vector<8x32xf32>
    tpu.vector_store %arg16[%c0_62, %c0_63], %144 {strides = array<i32>} : memref<8x32xf32, #tpu.memory_space<vmem>>, vector<8x32xf32>,
    %c0_64 = arith.constant 0 : index
    %c0_65 = arith.constant 0 : index
    %c0_66 = arith.constant 0 : index
    %c0_67 = arith.constant 0 : index
    %146 = vector.load %arg14[%c0_64, %c0_65, %c0_66, %c0_67] : memref<1x1x16x8xf32, #tpu.memory_space<vmem>>, vector<1x1x16x8xf32>
    %147 = vector.shape_cast %146 : vector<1x1x16x8xf32> to vector<16x8xf32>
    %148 = vector.shape_cast %52 : vector<16x8xf32> to vector<1x1x16x8xf32>
    tpu.vector_store %arg14[%c0_64, %c0_65, %c0_66, %c0_67], %148 {strides = array<i32>} : memref<1x1x16x8xf32, #tpu.memory_space<vmem>>, vector<1x1x16x8xf32>,
    %c0_68 = arith.constant 0 : index
    %c0_69 = arith.constant 0 : index
    %c0_70 = arith.constant 0 : index
    %c0_71 = arith.constant 0 : index
    %149 = vector.load %arg15[%c0_68, %c0_69, %c0_70, %c0_71] : memref<1x1x16x8xf32, #tpu.memory_space<vmem>>, vector<1x1x16x8xf32>
    %150 = vector.shape_cast %149 : vector<1x1x16x8xf32> to vector<16x8xf32>
    %151 = vector.shape_cast %55 : vector<16x8xf32> to vector<1x1x16x8xf32>
    tpu.vector_store %arg15[%c0_68, %c0_69, %c0_70, %c0_71], %151 {strides = array<i32>} : memref<1x1x16x8xf32, #tpu.memory_space<vmem>>, vector<1x1x16x8xf32>,
    %c1_i32 = arith.constant 1 : i32
    %152 = arith.cmpi eq, %arg1, %c1_i32 : i32
    %153 = arith.extui %152 : i1 to i32
    %c0_i32_72 = arith.constant 0 : i32
    %154 = arith.cmpi ne, %153, %c0_i32_72 : i32
    scf.if %154 {
      %c0_73 = arith.constant 0 : index
      %c0_74 = arith.constant 0 : index
      %155 = vector.load %arg13[%c0_73, %c0_74] : memref<8x32xf32, #tpu.memory_space<vmem>>, vector<8x32xf32>
      tpu.vector_store %arg13[%c0_73, %c0_74], %144 {strides = array<i32>} : memref<8x32xf32, #tpu.memory_space<vmem>>, vector<8x32xf32>,
    } else {
    }
    return
  }
  func.func @transform_0(%arg0: i32, %arg1: i32) -> (i32, i32) {
    %c0_i32 = arith.constant 0 : i32
    %c0_i32_0 = arith.constant 0 : i32
    return %arg0, %c0_i32 : i32, i32
  }
  func.func @transform_1(%arg0: i32, %arg1: i32) -> (i32, i32) {
    %c0_i32 = arith.constant 0 : i32
    %c0_i32_0 = arith.constant 0 : i32
    %c0_i32_1 = arith.constant 0 : i32
    return %c0_i32, %c0_i32_0 : i32, i32
  }
  func.func @transform_2(%arg0: i32, %arg1: i32) -> (i32, i32) {
    %c0_i32 = arith.constant 0 : i32
    %c0_i32_0 = arith.constant 0 : i32
    %c0_i32_1 = arith.constant 0 : i32
    return %c0_i32, %c0_i32_0 : i32, i32
  }
  func.func @transform_3(%arg0: i32, %arg1: i32) -> (i32, i32) {
    %c0_i32 = arith.constant 0 : i32
    %c0_i32_0 = arith.constant 0 : i32
    %c0_i32_1 = arith.constant 0 : i32
    return %c0_i32, %c0_i32_0 : i32, i32
  }
  func.func @transform_4(%arg0: i32, %arg1: i32) -> (i32, i32, i32, i32) {
    %c0_i32 = arith.constant 0 : i32
    %c0_i32_0 = arith.constant 0 : i32
    %c0_i32_1 = arith.constant 0 : i32
    return %arg1, %arg0, %c0_i32, %c0_i32_0 : i32, i32, i32, i32
  }
  func.func @transform_5(%arg0: i32, %arg1: i32) -> (i32, i32, i32, i32) {
    %c0_i32 = arith.constant 0 : i32
    %c0_i32_0 = arith.constant 0 : i32
    %c0_i32_1 = arith.constant 0 : i32
    return %arg1, %arg0, %c0_i32, %c0_i32_0 : i32, i32, i32, i32
  }
  func.func @transform_6(%arg0: i32, %arg1: i32) -> (i32, i32, i32) {
    %c0_i32 = arith.constant 0 : i32
    %c0_i32_0 = arith.constant 0 : i32
    %c0_i32_1 = arith.constant 0 : i32
    return %arg1, %c0_i32, %c0_i32_0 : i32, i32, i32
  }
  func.func @transform_7(%arg0: i32, %arg1: i32) -> (i32, i32, i32) {
    %c0_i32 = arith.constant 0 : i32
    %c0_i32_0 = arith.constant 0 : i32
    %c0_i32_1 = arith.constant 0 : i32
    return %arg1, %c0_i32, %c0_i32_0 : i32, i32, i32
  }
  func.func @transform_8(%arg0: i32, %arg1: i32) -> (i32, i32, i32) {
    %c0_i32 = arith.constant 0 : i32
    %c0_i32_0 = arith.constant 0 : i32
    %c0_i32_1 = arith.constant 0 : i32
    return %arg1, %c0_i32, %c0_i32_0 : i32, i32, i32
  }
  func.func @transform_9(%arg0: i32, %arg1: i32) -> (i32, i32, i32) {
    %c0_i32 = arith.constant 0 : i32
    %c0_i32_0 = arith.constant 0 : i32
    %c0_i32_1 = arith.constant 0 : i32
    return %arg1, %c0_i32, %c0_i32_0 : i32, i32, i32
  }
  func.func @transform_10(%arg0: i32, %arg1: i32) -> (i32, i32, i32) {
    %c0_i32 = arith.constant 0 : i32
    %c0_i32_0 = arith.constant 0 : i32
    %c0_i32_1 = arith.constant 0 : i32
    return %arg1, %c0_i32, %c0_i32_0 : i32, i32, i32
  }
  func.func @transform_11(%arg0: i32, %arg1: i32) -> (i32, i32) {
    %c0_i32 = arith.constant 0 : i32
    %c0_i32_0 = arith.constant 0 : i32
    return %arg0, %c0_i32 : i32, i32
  }
  func.func @transform_12(%arg0: i32, %arg1: i32) -> (i32, i32, i32, i32) {
    %c0_i32 = arith.constant 0 : i32
    %c0_i32_0 = arith.constant 0 : i32
    %c0_i32_1 = arith.constant 0 : i32
    return %arg1, %arg0, %c0_i32, %c0_i32_0 : i32, i32, i32, i32
  }
  func.func @transform_13(%arg0: i32, %arg1: i32) -> (i32, i32, i32, i32) {
    %c0_i32 = arith.constant 0 : i32
    %c0_i32_0 = arith.constant 0 : i32
    %c0_i32_1 = arith.constant 0 : i32
    return %arg1, %arg0, %c0_i32, %c0_i32_0 : i32, i32, i32, i32
  }
}

</mosaic_0001>

<llo_original>
// kernel: tpu_custom_call.1
$region0: #{tpu_custom_call.1}
  #allocation0 [shape = 'u32[]', space=smem, size = 0x4, offset = 0x4, fixed_abs, tag = 'smem constant byte address 0x4 - core index']
  #allocation1 [shape = 'u32[144,128]{1,0:T(1,128)}', space=vmem, size = 0x12000, scoped, tag = 'internal scratch']
  #allocation2 [shape = 'f32[8,32]{1,0:T(8,128)}', space=vmem, size = 0x1000, scoped, tag = 'scratch operand']
  %s0 = inlined_call_operand.hbm [shape: f32[16,32], index: 0, kind: input, shape index: {}]
  %s1 = inlined_call_operand.hbm [shape: f32[8,32], index: 1, kind: input, shape index: {}]
  %s2 = inlined_call_operand.hbm [shape: f32[8,32], index: 2, kind: input, shape index: {}]
  %s3 = inlined_call_operand.hbm [shape: f32[8,16], index: 3, kind: input, shape index: {}]
  %s4 = inlined_call_operand.hbm [shape: f32[2,2,8,8], index: 4, kind: input, shape index: {}]
  %s5 = inlined_call_operand.hbm [shape: f32[2,2,8,8], index: 5, kind: input, shape index: {}]
  %s6 = inlined_call_operand.hbm [shape: f32[2,1,32], index: 6, kind: input, shape index: {}]
  %s7 = inlined_call_operand.hbm [shape: f32[2,1,32], index: 7, kind: input, shape index: {}]
  %s8 = inlined_call_operand.hbm [shape: bf16[2,32,216], index: 8, kind: input, shape index: {}]
  %s9 = inlined_call_operand.hbm [shape: bf16[2,32,32], index: 9, kind: input, shape index: {}]
  %s10 = inlined_call_operand.hbm [shape: bf16[2,128,32], index: 10, kind: input, shape index: {}]
  %s11 = inlined_call_operand.hbm [shape: f32[16,32], index: 11, kind: output, shape index: {0}]
  %s12 = inlined_call_operand.hbm [shape: f32[2,2,16,8], index: 12, kind: output, shape index: {1}]
  %s13 = inlined_call_operand.hbm [shape: f32[2,2,16,8], index: 13, kind: output, shape index: {2}]
  %14 = xla_tuple %s11, %s12, %s13
  %s15 = sld [smem:[#allocation0]]
  $region145: #{tpu_custom_call.1} parent=0
    _
  %s17 = ssub.s32 1, %s15
  %s18 = scalar_select 0, %s17, %s15
  $region1: #{tpu_custom_call.1} parent=0
    #allocation3 [shape = 'u8[8192]{0}', space=vmem, size = 0x2000, scoped, tag = 'input window, operand 0']
    #allocation4 [shape = 's32[2]{0}', space=sflag, size = 0x8, scoped, tag = 'scoped memory for tpu_custom_call.1']
    #allocation5 [shape = 's32[2]{0}', space=sflag, size = 0x8, scoped, tag = 'scoped memory for tpu_custom_call.1']
    #allocation6 [shape = 'u8[4096]{0}', space=vmem, size = 0x1000, scoped, tag = 'input window, operand 1, single buffered']
    #allocation7 [shape = 's32[1]{0}', space=sflag, size = 0x4, scoped, tag = 'scoped memory for tpu_custom_call.1']
    #allocation8 [shape = 'u8[4096]{0}', space=vmem, size = 0x1000, scoped, tag = 'input window, operand 2, single buffered']
    #allocation9 [shape = 'u8[4096]{0}', space=vmem, size = 0x1000, scoped, tag = 'input window, operand 3, single buffered']
    #allocation10 [shape = 's32[1]{0}', space=sflag, size = 0x4, scoped, tag = 'scoped memory for tpu_custom_call.1']
    #allocation11 [shape = 'u8[8192]{0}', space=vmem, size = 0x2000, scoped, tag = 'input window, operand 4']
    #allocation12 [shape = 'u8[8192]{0}', space=vmem, size = 0x2000, scoped, tag = 'input window, operand 5']
    #allocation13 [shape = 'u8[1024]{0}', space=vmem, size = 0x400, scoped, tag = 'input window, operand 6']
    #allocation14 [shape = 'u8[1024]{0}', space=vmem, size = 0x400, scoped, tag = 'input window, operand 7']
    #allocation15 [shape = 'u8[32768]{0}', space=vmem, size = 0x8000, scoped, tag = 'input window, operand 8']
    #allocation16 [shape = 'u8[16384]{0}', space=vmem, size = 0x4000, scoped, tag = 'input window, operand 9']
    #allocation17 [shape = 'u8[65536]{0}', space=vmem, size = 0x10000, scoped, tag = 'input window, operand 10']
    #allocation18 [shape = 'u8[8192]{0}', space=vmem, size = 0x2000, scoped, tag = 'output window, operand 0']
    #allocation19 [shape = 'u8[16384]{0}', space=vmem, size = 0x4000, scoped, tag = 'output window, operand 1']
    #allocation20 [shape = 's32[2]{0}', space=sflag, size = 0x8, scoped, tag = 'scoped memory for tpu_custom_call.1']
    #allocation21 [shape = 'u8[16384]{0}', space=vmem, size = 0x4000, scoped, tag = 'output window, operand 2']
    %19 = vsyncpa [#allocation4], 0
    %s20 = scalar_lea.sflag [#allocation4], 1
    %21 = vsyncpa %s20, 0
    %22 = vsyncpa [#allocation7], 0
    %23 = vsyncpa [#allocation10], 0
    %24 = vsyncpa [#allocation5], 0
    %s25 = scalar_lea.sflag [#allocation5], 1
    %26 = vsyncpa %s25, 0
    %27 = vsyncpa [#allocation20], 0
    %s28 = scalar_lea.sflag [#allocation20], 1
    %29 = vsyncpa %s28, 0
    loop: start=0, step=1, limit=6
    $region2: #{tpu_custom_call.1} parent=1 // loop_pre_header
      _
    $region3: #{tpu_custom_call.1} parent=1 // loop_header
      %s31 = sphi 0, %s35
      %p32 = scmp.ge.s32.totalorder %s31, 6
      %s38 = sphi 0, %s50
      %s39 = sphi 0, %s46
      %s40 = sphi 0, %s38
      %s41 = sphi 0, %s39
      %s42 = sphi 0, %s40
      %s43 = sphi 0, %s41
      %s53 = sphi 0, %s55
      %s56 = sphi 0, %s53
      %s57 = sphi 0, %s56
      %s73 = sphi 0, %s57
      %s77 = sphi 0, %s77
      %s79 = sphi 0, %s77
      %s80 = sphi 0, %s79
      %s94 = sphi 0, %s80
      %s98 = sphi 0, %s98
      %s100 = sphi 0, %s98
      %s101 = sphi 0, %s100
      %s115 = sphi 0, %s101
      %s119 = sphi 0, %s119
      %s121 = sphi 0, %s119
      %s122 = sphi 0, %s121
      %s136 = sphi 0, %s122
      %s144 = sphi 0, %s146
      %s147 = sphi 0, %s144
      %s148 = sphi 0, %s147
      %s164 = sphi 0, %s148
      %s172 = sphi 0, %s174
      %s175 = sphi 0, %s172
      %s176 = sphi 0, %s175
      %s192 = sphi 0, %s176
      %s198 = sphi 0, %s200
      %s201 = sphi 0, %s198
      %s202 = sphi 0, %s201
      %s218 = sphi 0, %s202
      %s224 = sphi 0, %s226
      %s227 = sphi 0, %s224
      %s228 = sphi 0, %s227
      %s244 = sphi 0, %s228
      %s250 = sphi 0, %s252
      %s253 = sphi 0, %s250
      %s254 = sphi 0, %s253
      %s270 = sphi 0, %s254
      %s276 = sphi 0, %s278
      %s279 = sphi 0, %s276
      %s280 = sphi 0, %s279
      %s296 = sphi 0, %s280
      %s302 = sphi 0, %s304
      %s305 = sphi 0, %s302
      %s306 = sphi 0, %s305
      %s322 = sphi 0, %s306
      %s328 = sphi 0, %s330
      %s331 = sphi 0, %s328
      %s332 = sphi 0, %s331
      %s348 = sphi 0, %s332
      %s356 = sphi 0, %s358
      %s359 = sphi 0, %s356
      %s360 = sphi 0, %s359
      %s376 = sphi 0, %s360
      %s384 = sphi 0, %s386
      %s387 = sphi 0, %s384
      %s388 = sphi 0, %s387
      %s404 = sphi 0, %s388
    $region4: #{tpu_custom_call.1} parent=1 // loop_header_branch
      %34 = sbr.rel (%p32) target = $region8
    $region5: #{tpu_custom_call.1} parent=1 // loop_body
      %s36 = ssub.s32 %s31, 1
      %s37 = ssub.s32 %s31, 2
      %s44 = sadd.s32 1, %s39
      %p45 = scmp.ge.s32.totalorder %s44, 2
      %s46 = scalar_select %p45, 0, %s44
      %s47 = sadd.s32 1, %s38
      %s48 = scalar_select %p45, %s47, %s38
      %p49 = scmp.ge.s32.totalorder %s48, 2
      %s50 = scalar_select %p49, 0, %s48
      %s51 = ssub.s32 %s38, %s50
      %p52 = scmp.eq.s32.totalorder %s51, 0
      %s54 = sadd.s32 %s53, 1
      %s55 = scalar_select %p52, %s53, %s54
      %p58 = pneg %p52
      %p59 = scmp.eq.s32.totalorder %s31, 3
      %p60 = por %p58, %p59
      %p61 = scmp.ne.s32.totalorder %s53, %s56
      %p62 = scmp.eq.s32.totalorder %s31, 0
      %p63 = por %p61, %p62
      %p64 = scmp.ne.s32.totalorder %s53, %s56
      %p65 = scmp.eq.s32.totalorder %s36, 3
      %p66 = por %p64, %p65
      %p67 = scmp.ne.s32.totalorder %s56, %s57
      %p68 = scmp.eq.s32.totalorder %s36, 0
      %p69 = por %p67, %p68
      %p70 = scmp.ne.s32.totalorder %s56, %s57
      %p71 = scmp.eq.s32.totalorder %s37, 3
      %p72 = por %p70, %p71
      %p74 = scmp.ne.s32.totalorder %s57, %s73
      %p75 = scmp.eq.s32.totalorder %s37, 0
      %p76 = por %p74, %p75
      %s78 = sadd.s32 %s77, 1
      %p81 = scmp.eq.s32.totalorder %s31, 3
      %p82 = scmp.ne.s32.totalorder %s77, %s79
      %p83 = scmp.eq.s32.totalorder %s31, 0
      %p84 = por %p82, %p83
      %p85 = scmp.ne.s32.totalorder %s77, %s79
      %p86 = scmp.eq.s32.totalorder %s36, 3
      %p87 = por %p85, %p86
      %p88 = scmp.ne.s32.totalorder %s79, %s80
      %p89 = scmp.eq.s32.totalorder %s36, 0
      %p90 = por %p88, %p89
      %p91 = scmp.ne.s32.totalorder %s79, %s80
      %p92 = scmp.eq.s32.totalorder %s37, 3
      %p93 = por %p91, %p92
      %p95 = scmp.ne.s32.totalorder %s80, %s94
      %p96 = scmp.eq.s32.totalorder %s37, 0
      %p97 = por %p95, %p96
      %s99 = sadd.s32 %s98, 1
      %p102 = scmp.eq.s32.totalorder %s31, 3
      %p103 = scmp.ne.s32.totalorder %s98, %s100
      %p104 = scmp.eq.s32.totalorder %s31, 0
      %p105 = por %p103, %p104
      %p106 = scmp.ne.s32.totalorder %s98, %s100
      %p107 = scmp.eq.s32.totalorder %s36, 3
      %p108 = por %p106, %p107
      %p109 = scmp.ne.s32.totalorder %s100, %s101
      %p110 = scmp.eq.s32.totalorder %s36, 0
      %p111 = por %p109, %p110
      %p112 = scmp.ne.s32.totalorder %s100, %s101
      %p113 = scmp.eq.s32.totalorder %s37, 3
      %p114 = por %p112, %p113
      %p116 = scmp.ne.s32.totalorder %s101, %s115
      %p117 = scmp.eq.s32.totalorder %s37, 0
      %p118 = por %p116, %p117
      %s120 = sadd.s32 %s119, 1
      %p123 = scmp.eq.s32.totalorder %s31, 3
      %p124 = scmp.ne.s32.totalorder %s119, %s121
      %p125 = scmp.eq.s32.totalorder %s31, 0
      %p126 = por %p124, %p125
      %p127 = scmp.ne.s32.totalorder %s119, %s121
      %p128 = scmp.eq.s32.totalorder %s36, 3
      %p129 = por %p127, %p128
      %p130 = scmp.ne.s32.totalorder %s121, %s122
      %p131 = scmp.eq.s32.totalorder %s36, 0
      %p132 = por %p130, %p131
      %p133 = scmp.ne.s32.totalorder %s121, %s122
      %p134 = scmp.eq.s32.totalorder %s37, 3
      %p135 = por %p133, %p134
      %p137 = scmp.ne.s32.totalorder %s122, %s136
      %p138 = scmp.eq.s32.totalorder %s37, 0
      %p139 = por %p137, %p138
      %s140 = ssub.s32 %s39, %s46
      %s141 = ssub.s32 %s38, %s50
      %s142 = sor.u32 %s140, %s141
      %p143 = scmp.eq.s32.totalorder %s142, 0
      %s145 = sadd.s32 %s144, 1
      %s146 = scalar_select %p143, %s144, %s145
      %p149 = pneg %p143
      %p150 = scmp.eq.s32.totalorder %s31, 3
      %p151 = por %p149, %p150
      %p152 = scmp.ne.s32.totalorder %s144, %s147
      %p153 = scmp.eq.s32.totalorder %s31, 0
      %p154 = por %p152, %p153
      %p155 = scmp.ne.s32.totalorder %s144, %s147
      %p156 = scmp.eq.s32.totalorder %s36, 3
      %p157 = por %p155, %p156
      %p158 = scmp.ne.s32.totalorder %s147, %s148
      %p159 = scmp.eq.s32.totalorder %s36, 0
      %p160 = por %p158, %p159
      %p161 = scmp.ne.s32.totalorder %s147, %s148
      %p162 = scmp.eq.s32.totalorder %s37, 3
      %p163 = por %p161, %p162
      %p165 = scmp.ne.s32.totalorder %s148, %s164
      %p166 = scmp.eq.s32.totalorder %s37, 0
      %p167 = por %p165, %p166
      %s168 = ssub.s32 %s39, %s46
      %s169 = ssub.s32 %s38, %s50
      %s170 = sor.u32 %s168, %s169
      %p171 = scmp.eq.s32.totalorder %s170, 0
      %s173 = sadd.s32 %s172, 1
      %s174 = scalar_select %p171, %s172, %s173
      %p177 = pneg %p171
      %p178 = scmp.eq.s32.totalorder %s31, 3
      %p179 = por %p177, %p178
      %p180 = scmp.ne.s32.totalorder %s172, %s175
      %p181 = scmp.eq.s32.totalorder %s31, 0
      %p182 = por %p180, %p181
      %p183 = scmp.ne.s32.totalorder %s172, %s175
      %p184 = scmp.eq.s32.totalorder %s36, 3
      %p185 = por %p183, %p184
      %p186 = scmp.ne.s32.totalorder %s175, %s176
      %p187 = scmp.eq.s32.totalorder %s36, 0
      %p188 = por %p186, %p187
      %p189 = scmp.ne.s32.totalorder %s175, %s176
      %p190 = scmp.eq.s32.totalorder %s37, 3
      %p191 = por %p189, %p190
      %p193 = scmp.ne.s32.totalorder %s176, %s192
      %p194 = scmp.eq.s32.totalorder %s37, 0
      %p195 = por %p193, %p194
      %s196 = ssub.s32 %s39, %s46
      %p197 = scmp.eq.s32.totalorder %s196, 0
      %s199 = sadd.s32 %s198, 1
      %s200 = scalar_select %p197, %s198, %s199
      %p203 = pneg %p197
      %p204 = scmp.eq.s32.totalorder %s31, 3
      %p205 = por %p203, %p204
      %p206 = scmp.ne.s32.totalorder %s198, %s201
      %p207 = scmp.eq.s32.totalorder %s31, 0
      %p208 = por %p206, %p207
      %p209 = scmp.ne.s32.totalorder %s198, %s201
      %p210 = scmp.eq.s32.totalorder %s36, 3
      %p211 = por %p209, %p210
      %p212 = scmp.ne.s32.totalorder %s201, %s202
      %p213 = scmp.eq.s32.totalorder %s36, 0
      %p214 = por %p212, %p213
      %p215 = scmp.ne.s32.totalorder %s201, %s202
      %p216 = scmp.eq.s32.totalorder %s37, 3
      %p217 = por %p215, %p216
      %p219 = scmp.ne.s32.totalorder %s202, %s218
      %p220 = scmp.eq.s32.totalorder %s37, 0
      %p221 = por %p219, %p220
      %s222 = ssub.s32 %s39, %s46
      %p223 = scmp.eq.s32.totalorder %s222, 0
      %s225 = sadd.s32 %s224, 1
      %s226 = scalar_select %p223, %s224, %s225
      %p229 = pneg %p223
      %p230 = scmp.eq.s32.totalorder %s31, 3
      %p231 = por %p229, %p230
      %p232 = scmp.ne.s32.totalorder %s224, %s227
      %p233 = scmp.eq.s32.totalorder %s31, 0
      %p234 = por %p232, %p233
      %p235 = scmp.ne.s32.totalorder %s224, %s227
      %p236 = scmp.eq.s32.totalorder %s36, 3
      %p237 = por %p235, %p236
      %p238 = scmp.ne.s32.totalorder %s227, %s228
      %p239 = scmp.eq.s32.totalorder %s36, 0
      %p240 = por %p238, %p239
      %p241 = scmp.ne.s32.totalorder %s227, %s228
      %p242 = scmp.eq.s32.totalorder %s37, 3
      %p243 = por %p241, %p242
      %p245 = scmp.ne.s32.totalorder %s228, %s244
      %p246 = scmp.eq.s32.totalorder %s37, 0
      %p247 = por %p245, %p246
      %s248 = ssub.s32 %s39, %s46
      %p249 = scmp.eq.s32.totalorder %s248, 0
      %s251 = sadd.s32 %s250, 1
      %s252 = scalar_select %p249, %s250, %s251
      %p255 = pneg %p249
      %p256 = scmp.eq.s32.totalorder %s31, 3
      %p257 = por %p255, %p256
      %p258 = scmp.ne.s32.totalorder %s250, %s253
      %p259 = scmp.eq.s32.totalorder %s31, 0
      %p260 = por %p258, %p259
      %p261 = scmp.ne.s32.totalorder %s250, %s253
      %p262 = scmp.eq.s32.totalorder %s36, 3
      %p263 = por %p261, %p262
      %p264 = scmp.ne.s32.totalorder %s253, %s254
      %p265 = scmp.eq.s32.totalorder %s36, 0
      %p266 = por %p264, %p265
      %p267 = scmp.ne.s32.totalorder %s253, %s254
      %p268 = scmp.eq.s32.totalorder %s37, 3
      %p269 = por %p267, %p268
      %p271 = scmp.ne.s32.totalorder %s254, %s270
      %p272 = scmp.eq.s32.totalorder %s37, 0
      %p273 = por %p271, %p272
      %s274 = ssub.s32 %s39, %s46
      %p275 = scmp.eq.s32.totalorder %s274, 0
      %s277 = sadd.s32 %s276, 1
      %s278 = scalar_select %p275, %s276, %s277
      %p281 = pneg %p275
      %p282 = scmp.eq.s32.totalorder %s31, 3
      %p283 = por %p281, %p282
      %p284 = scmp.ne.s32.totalorder %s276, %s279
      %p285 = scmp.eq.s32.totalorder %s31, 0
      %p286 = por %p284, %p285
      %p287 = scmp.ne.s32.totalorder %s276, %s279
      %p288 = scmp.eq.s32.totalorder %s36, 3
      %p289 = por %p287, %p288
      %p290 = scmp.ne.s32.totalorder %s279, %s280
      %p291 = scmp.eq.s32.totalorder %s36, 0
      %p292 = por %p290, %p291
      %p293 = scmp.ne.s32.totalorder %s279, %s280
      %p294 = scmp.eq.s32.totalorder %s37, 3
      %p295 = por %p293, %p294
      %p297 = scmp.ne.s32.totalorder %s280, %s296
      %p298 = scmp.eq.s32.totalorder %s37, 0
      %p299 = por %p297, %p298
      %s300 = ssub.s32 %s39, %s46
      %p301 = scmp.eq.s32.totalorder %s300, 0
      %s303 = sadd.s32 %s302, 1
      %s304 = scalar_select %p301, %s302, %s303
      %p307 = pneg %p301
      %p308 = scmp.eq.s32.totalorder %s31, 3
      %p309 = por %p307, %p308
      %p310 = scmp.ne.s32.totalorder %s302, %s305
      %p311 = scmp.eq.s32.totalorder %s31, 0
      %p312 = por %p310, %p311
      %p313 = scmp.ne.s32.totalorder %s302, %s305
      %p314 = scmp.eq.s32.totalorder %s36, 3
      %p315 = por %p313, %p314
      %p316 = scmp.ne.s32.totalorder %s305, %s306
      %p317 = scmp.eq.s32.totalorder %s36, 0
      %p318 = por %p316, %p317
      %p319 = scmp.ne.s32.totalorder %s305, %s306
      %p320 = scmp.eq.s32.totalorder %s37, 3
      %p321 = por %p319, %p320
      %p323 = scmp.ne.s32.totalorder %s306, %s322
      %p324 = scmp.eq.s32.totalorder %s37, 0
      %p325 = por %p323, %p324
      %s326 = ssub.s32 %s38, %s50
      %p327 = scmp.eq.s32.totalorder %s326, 0
      %s329 = sadd.s32 %s328, 1
      %s330 = scalar_select %p327, %s328, %s329
      %p333 = pneg %p327
      %p334 = scmp.eq.s32.totalorder %s31, 3
      %p335 = por %p333, %p334
      %p336 = scmp.ne.s32.totalorder %s328, %s331
      %p337 = scmp.eq.s32.totalorder %s31, 0
      %p338 = por %p336, %p337
      %p339 = scmp.ne.s32.totalorder %s328, %s331
      %p340 = scmp.eq.s32.totalorder %s36, 3
      %p341 = por %p339, %p340
      %p342 = scmp.ne.s32.totalorder %s331, %s332
      %p343 = scmp.eq.s32.totalorder %s36, 0
      %p344 = por %p342, %p343
      %p345 = scmp.ne.s32.totalorder %s331, %s332
      %p346 = scmp.eq.s32.totalorder %s37, 3
      %p347 = por %p345, %p346
      %p349 = scmp.ne.s32.totalorder %s332, %s348
      %p350 = scmp.eq.s32.totalorder %s37, 0
      %p351 = por %p349, %p350
      %s352 = ssub.s32 %s39, %s46
      %s353 = ssub.s32 %s38, %s50
      %s354 = sor.u32 %s352, %s353
      %p355 = scmp.eq.s32.totalorder %s354, 0
      %s357 = sadd.s32 %s356, 1
      %s358 = scalar_select %p355, %s356, %s357
      %p361 = pneg %p355
      %p362 = scmp.eq.s32.totalorder %s31, 3
      %p363 = por %p361, %p362
      %p364 = scmp.ne.s32.totalorder %s356, %s359
      %p365 = scmp.eq.s32.totalorder %s31, 0
      %p366 = por %p364, %p365
      %p367 = scmp.ne.s32.totalorder %s356, %s359
      %p368 = scmp.eq.s32.totalorder %s36, 3
      %p369 = por %p367, %p368
      %p370 = scmp.ne.s32.totalorder %s359, %s360
      %p371 = scmp.eq.s32.totalorder %s36, 0
      %p372 = por %p370, %p371
      %p373 = scmp.ne.s32.totalorder %s359, %s360
      %p374 = scmp.eq.s32.totalorder %s37, 3
      %p375 = por %p373, %p374
      %p377 = scmp.ne.s32.totalorder %s360, %s376
      %p378 = scmp.eq.s32.totalorder %s37, 0
      %p379 = por %p377, %p378
      %s380 = ssub.s32 %s39, %s46
      %s381 = ssub.s32 %s38, %s50
      %s382 = sor.u32 %s380, %s381
      %p383 = scmp.eq.s32.totalorder %s382, 0
      %s385 = sadd.s32 %s384, 1
      %s386 = scalar_select %p383, %s384, %s385
      %p389 = pneg %p383
      %p390 = scmp.eq.s32.totalorder %s31, 3
      %p391 = por %p389, %p390
      %p392 = scmp.ne.s32.totalorder %s384, %s387
      %p393 = scmp.eq.s32.totalorder %s31, 0
      %p394 = por %p392, %p393
      %p395 = scmp.ne.s32.totalorder %s384, %s387
      %p396 = scmp.eq.s32.totalorder %s36, 3
      %p397 = por %p395, %p396
      %p398 = scmp.ne.s32.totalorder %s387, %s388
      %p399 = scmp.eq.s32.totalorder %s36, 0
      %p400 = por %p398, %p399
      %p401 = scmp.ne.s32.totalorder %s387, %s388
      %p402 = scmp.eq.s32.totalorder %s37, 3
      %p403 = por %p401, %p402
      %p405 = scmp.ne.s32.totalorder %s388, %s404
      %p406 = scmp.eq.s32.totalorder %s37, 0
      %p407 = por %p405, %p406
      %p408 = scmp.le.s32.totalorder 1, %s31
      %p409 = scmp.lt.s32.totalorder %s31, 5
      %p410 = pnand %p408, %p409
      %p411 = pneg %p410
      // Predicated region
      $region9: #{tpu_custom_call.1} parent=5 // pred_check
        _
      $region10: #{tpu_custom_call.1} parent=5 // pred_check_branch
        %413 = sbr.rel (%p410) target = $region12
      $region11: #{tpu_custom_call.1} parent=5 // pred_region
        %s414 = ssub.s32 %s31, 1
        // Predicated region
        $region13: #{tpu_custom_call.1} parent=11 // pred_check
          %p415 = pneg %p90
        $region14: #{tpu_custom_call.1} parent=11 // pred_check_branch
          %417 = sbr.rel (%p415) target = $region16
        $region15: #{tpu_custom_call.1} parent=11 // pred_region
          %s419 = ssub.s32 128, 128
          %420 = vsyncadd [#allocation7], %s419
          %s422 = sshll.u32 [#allocation6], 4
          %s423 = int_to_ptr.vmem [resolvable:$true] %s422
          %425 = dma.hbm_to_vmem [thread:$0]  %s1, 128, %s423, [#allocation7]
        $region16: #{tpu_custom_call.1} parent=11 // pred_fallthru
          _
        // Predicated region
        $region17: #{tpu_custom_call.1} parent=11 // pred_check
          %p426 = pneg %p111
        $region18: #{tpu_custom_call.1} parent=11 // pred_check_branch
          %428 = sbr.rel (%p426) target = $region20
        $region19: #{tpu_custom_call.1} parent=11 // pred_region
          %s430 = ssub.s32 128, 128
          %431 = vsyncadd [#allocation7], %s430
          %s433 = sshll.u32 [#allocation8], 4
          %s434 = int_to_ptr.vmem [resolvable:$true] %s433
          %436 = dma.hbm_to_vmem [thread:$0]  %s2, 128, %s434, [#allocation7]
        $region20: #{tpu_custom_call.1} parent=11 // pred_fallthru
          _
        // Predicated region
        $region21: #{tpu_custom_call.1} parent=11 // pred_check
          %p437 = pneg %p132
        $region22: #{tpu_custom_call.1} parent=11 // pred_check_branch
          %439 = sbr.rel (%p437) target = $region24
        $region23: #{tpu_custom_call.1} parent=11 // pred_region
          %s441 = ssub.s32 128, 128
          %442 = vsyncadd [#allocation10], %s441
          %s444 = sshll.u32 [#allocation9], 4
          %s445 = int_to_ptr.vmem [resolvable:$true] %s444
          %447 = dma.hbm_to_vmem [thread:$0]  %s3, 128, %s445, [#allocation10]
        $region24: #{tpu_custom_call.1} parent=11 // pred_fallthru
          _
      $region12: #{tpu_custom_call.1} parent=5 // pred_fallthru
        _
      %p448 = scmp.lt.s32.totalorder %s31, 4
      // Predicated region
      $region25: #{tpu_custom_call.1} parent=5 // pred_check
        %p449 = pneg %p448
      $region26: #{tpu_custom_call.1} parent=5 // pred_check_branch
        %451 = sbr.rel (%p449) target = $region28
      $region27: #{tpu_custom_call.1} parent=5 // pred_region
        // Predicated region
        $region29: #{tpu_custom_call.1} parent=27 // pred_check
          %p452 = pneg %p63
        $region30: #{tpu_custom_call.1} parent=27 // pred_check_branch
          %454 = sbr.rel (%p452) target = $region32
        $region31: #{tpu_custom_call.1} parent=27 // pred_region
          %s455 = sand.u32 %s31, 1
          %s456 = scalar_lea.sflag [#allocation4], %s455
          %s457 = sand.u32 %s53, 1
          %s458 = smul.addr %s457, 8
          %s459 = scalar_lea.vmem [#allocation3], %s458
          %s461 = ssub.s32 128, 128
          %462 = vsyncadd %s456, %s461
          %s463 = smul.addr %s38, 128
          %s464 = scalar_lea.hbm %s0, %s463
          %s466 = sshll.u32 %s459, 4
          %s467 = int_to_ptr.vmem [resolvable:$true] %s466
          %469 = dma.hbm_to_vmem [thread:$0]  %s464, 128, %s467, %s456
        $region32: #{tpu_custom_call.1} parent=27 // pred_fallthru
          _
        // Predicated region
        $region33: #{tpu_custom_call.1} parent=27 // pred_check
          %p470 = pneg %p154
        $region34: #{tpu_custom_call.1} parent=27 // pred_check_branch
          %472 = sbr.rel (%p470) target = $region36
        $region35: #{tpu_custom_call.1} parent=27 // pred_region
          %s473 = sand.u32 %s31, 1
          %s474 = scalar_lea.sflag [#allocation4], %s473
          %s475 = sand.u32 %s144, 1
          %s476 = smul.addr %s475, 8
          %s477 = scalar_lea.vmem [#allocation11], %s476
          %s479 = ssub.s32 128, 128
          %480 = vsyncadd %s474, %s479
          %s481 = smul.addr %s39, 2
          %s482 = sadd.s32 %s38, %s481
          %s483 = smul.addr %s482, 128
          %s484 = scalar_lea.hbm %s4, %s483
          %s486 = sshll.u32 %s477, 4
          %s487 = int_to_ptr.vmem [resolvable:$true] %s486
          %489 = dma.hbm_to_vmem [thread:$0]  %s484, 128, %s487, %s474
        $region36: #{tpu_custom_call.1} parent=27 // pred_fallthru
          _
        // Predicated region
        $region37: #{tpu_custom_call.1} parent=27 // pred_check
          %p490 = pneg %p182
        $region38: #{tpu_custom_call.1} parent=27 // pred_check_branch
          %492 = sbr.rel (%p490) target = $region40
        $region39: #{tpu_custom_call.1} parent=27 // pred_region
          %s493 = sand.u32 %s31, 1
          %s494 = scalar_lea.sflag [#allocation4], %s493
          %s495 = sand.u32 %s172, 1
          %s496 = smul.addr %s495, 8
          %s497 = scalar_lea.vmem [#allocation12], %s496
          %s499 = ssub.s32 128, 128
          %500 = vsyncadd %s494, %s499
          %s501 = smul.addr %s39, 2
          %s502 = sadd.s32 %s38, %s501
          %s503 = smul.addr %s502, 128
          %s504 = scalar_lea.hbm %s5, %s503
          %s506 = sshll.u32 %s497, 4
          %s507 = int_to_ptr.vmem [resolvable:$true] %s506
          %509 = dma.hbm_to_vmem [thread:$0]  %s504, 128, %s507, %s494
        $region40: #{tpu_custom_call.1} parent=27 // pred_fallthru
          _
        // Predicated region
        $region41: #{tpu_custom_call.1} parent=27 // pred_check
          %p510 = pneg %p208
        $region42: #{tpu_custom_call.1} parent=27 // pred_check_branch
          %512 = sbr.rel (%p510) target = $region44
        $region43: #{tpu_custom_call.1} parent=27 // pred_region
          %s513 = sand.u32 %s31, 1
          %s514 = scalar_lea.sflag [#allocation4], %s513
          %s515 = sand.u32 %s198, 1
          %s516 = scalar_lea.vmem [#allocation13], %s515
          %s518 = ssub.s32 16, 16
          %519 = vsyncadd %s514, %s518
          %s520 = smul.addr %s39, 16
          %s521 = scalar_lea.hbm %s6, %s520
          %s523 = sshll.u32 %s516, 4
          %s524 = int_to_ptr.vmem [resolvable:$true] %s523
          %526 = dma.hbm_to_vmem [thread:$0]  %s521, 16, %s524, %s514
        $region44: #{tpu_custom_call.1} parent=27 // pred_fallthru
          _
        // Predicated region
        $region45: #{tpu_custom_call.1} parent=27 // pred_check
          %p527 = pneg %p234
        $region46: #{tpu_custom_call.1} parent=27 // pred_check_branch
          %529 = sbr.rel (%p527) target = $region48
        $region47: #{tpu_custom_call.1} parent=27 // pred_region
          %s530 = sand.u32 %s31, 1
          %s531 = scalar_lea.sflag [#allocation4], %s530
          %s532 = sand.u32 %s224, 1
          %s533 = scalar_lea.vmem [#allocation14], %s532
          %s535 = ssub.s32 16, 16
          %536 = vsyncadd %s531, %s535
          %s537 = smul.addr %s39, 16
          %s538 = scalar_lea.hbm %s7, %s537
          %s540 = sshll.u32 %s533, 4
          %s541 = int_to_ptr.vmem [resolvable:$true] %s540
          %543 = dma.hbm_to_vmem [thread:$0]  %s538, 16, %s541, %s531
        $region48: #{tpu_custom_call.1} parent=27 // pred_fallthru
          _
        // Predicated region
        $region49: #{tpu_custom_call.1} parent=27 // pred_check
          %p544 = pneg %p260
        $region50: #{tpu_custom_call.1} parent=27 // pred_check_branch
          %546 = sbr.rel (%p544) target = $region52
        $region51: #{tpu_custom_call.1} parent=27 // pred_region
          %s547 = sand.u32 %s31, 1
          %s548 = scalar_lea.sflag [#allocation4], %s547
          %s549 = sand.u32 %s250, 1
          %s550 = smul.addr %s549, 32
          %s551 = scalar_lea.vmem [#allocation15], %s550
          %s553 = ssub.s32 512, 512
          %554 = vsyncadd %s548, %s553
          %s555 = smul.addr %s39, 8
          %s556 = smul.addr %s555, 64
          %s557 = scalar_lea.hbm %s8, %s556
          %s558 = sshll.u32 %s551, 4
          %s559 = int_to_ptr.vmem [resolvable:$true] %s558
          %564 = dma.hbm_to_vmem [thread:$0]  %s557, 512, %s559, %s548, 128, 128, 8
        $region52: #{tpu_custom_call.1} parent=27 // pred_fallthru
          _
        // Predicated region
        $region53: #{tpu_custom_call.1} parent=27 // pred_check
          %p565 = pneg %p286
        $region54: #{tpu_custom_call.1} parent=27 // pred_check_branch
          %567 = sbr.rel (%p565) target = $region56
        $region55: #{tpu_custom_call.1} parent=27 // pred_region
          %s568 = sand.u32 %s31, 1
          %s569 = scalar_lea.sflag [#allocation4], %s568
          %s570 = sand.u32 %s276, 1
          %s571 = smul.addr %s570, 16
          %s572 = scalar_lea.vmem [#allocation16], %s571
          %s574 = ssub.s32 256, 256
          %575 = vsyncadd %s569, %s574
          %s576 = smul.addr %s39, 4
          %s577 = smul.addr %s576, 64
          %s578 = scalar_lea.hbm %s9, %s577
          %s579 = sshll.u32 %s572, 4
          %s580 = int_to_ptr.vmem [resolvable:$true] %s579
          %585 = dma.hbm_to_vmem [thread:$0]  %s578, 256, %s580, %s569, 64, 64, 4
        $region56: #{tpu_custom_call.1} parent=27 // pred_fallthru
          _
        // Predicated region
        $region57: #{tpu_custom_call.1} parent=27 // pred_check
          %p586 = pneg %p312
        $region58: #{tpu_custom_call.1} parent=27 // pred_check_branch
          %588 = sbr.rel (%p586) target = $region60
        $region59: #{tpu_custom_call.1} parent=27 // pred_region
          %s589 = sand.u32 %s31, 1
          %s590 = scalar_lea.sflag [#allocation4], %s589
          %s591 = sand.u32 %s302, 1
          %s592 = smul.addr %s591, 64
          %s593 = scalar_lea.vmem [#allocation17], %s592
          %s595 = ssub.s32 1024, 1024
          %596 = vsyncadd %s590, %s595
          %s597 = smul.addr %s39, 16
          %s598 = smul.addr %s597, 64
          %s599 = scalar_lea.hbm %s10, %s598
          %s600 = sshll.u32 %s593, 4
          %s601 = int_to_ptr.vmem [resolvable:$true] %s600
          %606 = dma.hbm_to_vmem [thread:$0]  %s599, 1024, %s601, %s590, 64, 64, 4
        $region60: #{tpu_custom_call.1} parent=27 // pred_fallthru
          _
      $region28: #{tpu_custom_call.1} parent=5 // pred_fallthru
        _
      %p607 = scmp.le.s32.totalorder 1, %s31
      %p608 = scmp.lt.s32.totalorder %s31, 5
      %p609 = pnand %p607, %p608
      %p610 = pneg %p609
      // Predicated region
      $region61: #{tpu_custom_call.1} parent=5 // pred_check
        _
      $region62: #{tpu_custom_call.1} parent=5 // pred_check_branch
        %612 = sbr.rel (%p609) target = $region64
      $region63: #{tpu_custom_call.1} parent=5 // pred_region
        %s613 = ssub.s32 %s31, 1
        %s614 = sand.u32 %s36, 1
        %s615 = scalar_lea.sflag [#allocation4], %s614
        %s616 = sand.u32 %s56, 1
        %s617 = smul.addr %s616, 8
        %s618 = scalar_lea.vmem [#allocation3], %s617
        // Predicated region
        $region65: #{tpu_custom_call.1} parent=63 // pred_check
          %p619 = pneg %p69
        $region66: #{tpu_custom_call.1} parent=63 // pred_check_branch
          %621 = sbr.rel (%p619) target = $region68
        $region67: #{tpu_custom_call.1} parent=63 // pred_region
          %622 = dma.done %s615, 128
        $region68: #{tpu_custom_call.1} parent=63 // pred_fallthru
          _
        // Predicated region
        $region69: #{tpu_custom_call.1} parent=63 // pred_check
          %p623 = pneg %p90
        $region70: #{tpu_custom_call.1} parent=63 // pred_check_branch
          %625 = sbr.rel (%p623) target = $region72
        $region71: #{tpu_custom_call.1} parent=63 // pred_region
          %626 = dma.done [#allocation7], 128
        $region72: #{tpu_custom_call.1} parent=63 // pred_fallthru
          _
        // Predicated region
        $region73: #{tpu_custom_call.1} parent=63 // pred_check
          %p627 = pneg %p111
        $region74: #{tpu_custom_call.1} parent=63 // pred_check_branch
          %629 = sbr.rel (%p627) target = $region76
        $region75: #{tpu_custom_call.1} parent=63 // pred_region
          %630 = dma.done [#allocation7], 128
        $region76: #{tpu_custom_call.1} parent=63 // pred_fallthru
          _
        // Predicated region
        $region77: #{tpu_custom_call.1} parent=63 // pred_check
          %p631 = pneg %p132
        $region78: #{tpu_custom_call.1} parent=63 // pred_check_branch
          %633 = sbr.rel (%p631) target = $region80
        $region79: #{tpu_custom_call.1} parent=63 // pred_region
          %634 = dma.done [#allocation10], 128
        $region80: #{tpu_custom_call.1} parent=63 // pred_fallthru
          _
        %s635 = sand.u32 %s36, 1
        %s636 = scalar_lea.sflag [#allocation4], %s635
        %s637 = sand.u32 %s147, 1
        %s638 = smul.addr %s637, 8
        %s639 = scalar_lea.vmem [#allocation11], %s638
        // Predicated region
        $region81: #{tpu_custom_call.1} parent=63 // pred_check
          %p640 = pneg %p160
        $region82: #{tpu_custom_call.1} parent=63 // pred_check_branch
          %642 = sbr.rel (%p640) target = $region84
        $region83: #{tpu_custom_call.1} parent=63 // pred_region
          %643 = dma.done %s636, 128
        $region84: #{tpu_custom_call.1} parent=63 // pred_fallthru
          _
        %s644 = sand.u32 %s36, 1
        %s645 = scalar_lea.sflag [#allocation4], %s644
        %s646 = sand.u32 %s175, 1
        %s647 = smul.addr %s646, 8
        %s648 = scalar_lea.vmem [#allocation12], %s647
        // Predicated region
        $region85: #{tpu_custom_call.1} parent=63 // pred_check
          %p649 = pneg %p188
        $region86: #{tpu_custom_call.1} parent=63 // pred_check_branch
          %651 = sbr.rel (%p649) target = $region88
        $region87: #{tpu_custom_call.1} parent=63 // pred_region
          %652 = dma.done %s645, 128
        $region88: #{tpu_custom_call.1} parent=63 // pred_fallthru
          _
        %s653 = sand.u32 %s36, 1
        %s654 = scalar_lea.sflag [#allocation4], %s653
        %s655 = sand.u32 %s201, 1
        %s656 = scalar_lea.vmem [#allocation13], %s655
        // Predicated region
        $region89: #{tpu_custom_call.1} parent=63 // pred_check
          %p657 = pneg %p214
        $region90: #{tpu_custom_call.1} parent=63 // pred_check_branch
          %659 = sbr.rel (%p657) target = $region92
        $region91: #{tpu_custom_call.1} parent=63 // pred_region
          %660 = dma.done %s654, 16
        $region92: #{tpu_custom_call.1} parent=63 // pred_fallthru
          _
        %s661 = sand.u32 %s36, 1
        %s662 = scalar_lea.sflag [#allocation4], %s661
        %s663 = sand.u32 %s227, 1
        %s664 = scalar_lea.vmem [#allocation14], %s663
        // Predicated region
        $region93: #{tpu_custom_call.1} parent=63 // pred_check
          %p665 = pneg %p240
        $region94: #{tpu_custom_call.1} parent=63 // pred_check_branch
          %667 = sbr.rel (%p665) target = $region96
        $region95: #{tpu_custom_call.1} parent=63 // pred_region
          %668 = dma.done %s662, 16
        $region96: #{tpu_custom_call.1} parent=63 // pred_fallthru
          _
        %s669 = sand.u32 %s36, 1
        %s670 = scalar_lea.sflag [#allocation4], %s669
        %s671 = sand.u32 %s253, 1
        %s672 = smul.addr %s671, 32
        %s673 = scalar_lea.vmem [#allocation15], %s672
        // Predicated region
        $region97: #{tpu_custom_call.1} parent=63 // pred_check
          %p674 = pneg %p266
        $region98: #{tpu_custom_call.1} parent=63 // pred_check_branch
          %676 = sbr.rel (%p674) target = $region100
        $region99: #{tpu_custom_call.1} parent=63 // pred_region
          %677 = dma.done %s670, 512
        $region100: #{tpu_custom_call.1} parent=63 // pred_fallthru
          _
        %s678 = sand.u32 %s36, 1
        %s679 = scalar_lea.sflag [#allocation4], %s678
        %s680 = sand.u32 %s279, 1
        %s681 = smul.addr %s680, 16
        %s682 = scalar_lea.vmem [#allocation16], %s681
        // Predicated region
        $region101: #{tpu_custom_call.1} parent=63 // pred_check
          %p683 = pneg %p292
        $region102: #{tpu_custom_call.1} parent=63 // pred_check_branch
          %685 = sbr.rel (%p683) target = $region104
        $region103: #{tpu_custom_call.1} parent=63 // pred_region
          %686 = dma.done %s679, 256
        $region104: #{tpu_custom_call.1} parent=63 // pred_fallthru
          _
        %s687 = sand.u32 %s36, 1
        %s688 = scalar_lea.sflag [#allocation4], %s687
        %s689 = sand.u32 %s305, 1
        %s690 = smul.addr %s689, 64
        %s691 = scalar_lea.vmem [#allocation17], %s690
        // Predicated region
        $region105: #{tpu_custom_call.1} parent=63 // pred_check
          %p692 = pneg %p318
        $region106: #{tpu_custom_call.1} parent=63 // pred_check_branch
          %694 = sbr.rel (%p692) target = $region108
        $region107: #{tpu_custom_call.1} parent=63 // pred_region
          %695 = dma.done %s688, 1024
        $region108: #{tpu_custom_call.1} parent=63 // pred_fallthru
          _
        %s696 = sand.u32 %s36, 1
        %s697 = scalar_lea.sflag [#allocation4], %s696
        %s698 = sand.u32 %s56, 1
        %s699 = smul.addr %s698, 8
        %s700 = scalar_lea.vmem [#allocation3], %s699
        %p701 = pneg %p69
        %p702 = pneg %p66
        %p703 = pneg %p90
        %p704 = pneg %p87
        %p705 = pneg %p111
        %p706 = pneg %p108
        %p707 = pneg %p132
        %p708 = pneg %p129
        %s709 = sand.u32 %s36, 1
        %s710 = scalar_lea.sflag [#allocation4], %s709
        %s711 = sand.u32 %s147, 1
        %s712 = smul.addr %s711, 8
        %s713 = scalar_lea.vmem [#allocation11], %s712
        %p714 = pneg %p160
        %p715 = pneg %p157
        %s716 = sand.u32 %s36, 1
        %s717 = scalar_lea.sflag [#allocation4], %s716
        %s718 = sand.u32 %s175, 1
        %s719 = smul.addr %s718, 8
        %s720 = scalar_lea.vmem [#allocation12], %s719
        %p721 = pneg %p188
        %p722 = pneg %p185
        %s723 = sand.u32 %s36, 1
        %s724 = scalar_lea.sflag [#allocation4], %s723
        %s725 = sand.u32 %s201, 1
        %s726 = scalar_lea.vmem [#allocation13], %s725
        %p727 = pneg %p214
        %p728 = pneg %p211
        %s729 = sand.u32 %s36, 1
        %s730 = scalar_lea.sflag [#allocation4], %s729
        %s731 = sand.u32 %s227, 1
        %s732 = scalar_lea.vmem [#allocation14], %s731
        %p733 = pneg %p240
        %p734 = pneg %p237
        %s735 = sand.u32 %s36, 1
        %s736 = scalar_lea.sflag [#allocation4], %s735
        %s737 = sand.u32 %s253, 1
        %s738 = smul.addr %s737, 32
        %s739 = scalar_lea.vmem [#allocation15], %s738
        %p740 = pneg %p266
        %p741 = pneg %p263
        %s742 = sand.u32 %s36, 1
        %s743 = scalar_lea.sflag [#allocation4], %s742
        %s744 = sand.u32 %s279, 1
        %s745 = smul.addr %s744, 16
        %s746 = scalar_lea.vmem [#allocation16], %s745
        %p747 = pneg %p292
        %p748 = pneg %p289
        %s749 = sand.u32 %s36, 1
        %s750 = scalar_lea.sflag [#allocation4], %s749
        %s751 = sand.u32 %s305, 1
        %s752 = smul.addr %s751, 64
        %s753 = scalar_lea.vmem [#allocation17], %s752
        %p754 = pneg %p318
        %p755 = pneg %p315
        %p756 = pneg %p344
        %p757 = pneg %p341
        %s758 = sand.u32 %s331, 1
        %s759 = scalar_lea.sflag [#allocation5], %s758
        %s760 = sand.u32 %s331, 1
        %s761 = smul.addr %s760, 8
        %s762 = scalar_lea.vmem [#allocation18], %s761
        %p763 = pneg %p372
        %p764 = pneg %p369
        %s765 = sand.u32 %s36, 1
        %s766 = scalar_lea.sflag [#allocation20], %s765
        %s767 = sand.u32 %s359, 1
        %s768 = smul.addr %s767, 16
        %s769 = scalar_lea.vmem [#allocation19], %s768
        %p770 = pneg %p400
        %p771 = pneg %p397
        %s772 = sand.u32 %s36, 1
        %s773 = scalar_lea.sflag [#allocation20], %s772
        %s774 = sand.u32 %s387, 1
        %s775 = smul.addr %s774, 16
        %s776 = scalar_lea.vmem [#allocation21], %s775
        %p778 = scmp.eq.s32.totalorder %s41, 0
        // Predicated region
        $region109: #{tpu_custom_call.1} parent=63 // pred_check
          %p779 = pneg %p778
        $region110: #{tpu_custom_call.1} parent=63 // pred_check_branch
          %781 = sbr.rel (%p779) target = $region112
        $region111: #{tpu_custom_call.1} parent=63 // pred_region
          %v782 = vld [vmem:[%s618] sm:$0xff]
          %vm783 = vcmask 261120
          %784 = vst.msk [vmem:[#allocation2] sm:$0xff] %vm783, %v782
        $region112: #{tpu_custom_call.1} parent=63 // pred_fallthru
          _
        %v785 = vld [vmem:[#allocation2] sm:$0xff]
        %vm786 = vcmask 261120
        %v787 = vsel %vm786, %v785, 0.0
        %788 = vadd.xlane.f32.xlu0 %v787
        %v789 = vpop.xlane.xlu0 %788
        %v790 = vrcp.pop 32.0
        %v791 = vmul.f32 %v789, %v790
        %v792 = vsub.f32 %v785, %v791
        %v793 = vmul.f32 %v792, %v792
        %v794 = vsel %vm786, %v793, 0.0
        %795 = vadd.xlane.f32.xlu0 %v794
        %v796 = vpop.xlane.xlu0 %795
        %v797 = vmul.f32 %v796, %v790
        %v798 = vadd.f32 %v797, 1e-05
        %v799 = vrsqrt.pop %v798
        %v800 = vmul.f32 %v792, %v799
        %v801 = vld [vmem:[%s656] sm:$0x1]
        %v803 = vlaneseq
        %v804 = vshrl.u32 %v803, 7
        %v805 = vsub.s32 0, %v804
        %v806 = vrot.slane %v801, %v805
        %v808 = vmul.f32 %v800, %v806
        %v809 = vld [vmem:[%s664] sm:$0x1]
        %v811 = vlaneseq
        %v812 = vshrl.u32 %v811, 7
        %v813 = vsub.s32 0, %v812
        %v814 = vrot.slane %v809, %v813
        %v816 = vadd.f32 %v808, %v814
        %v817 = vpack.c.bf16 %v816, %v816
        %v818 = vld [vmem:[%s673] sm:$0xff]
        %v819 = vld [vmem:[%s673 + $0x8] sm:$0xff]
        %v820 = vld [vmem:[%s673 + $0x10] sm:$0xff]
        %v821 = vld [vmem:[%s673 + $0x18] sm:$0xff]
        %v826 = vunpack.c.l.b16 %v818
        %v827 = vunpack.c.h.b16 %v818
        %v828 = vunpack.c.l.b16 %v819
        %v829 = vunpack.c.h.b16 %v819
        %v830 = vunpack.c.l.b16 %v820
        %v831 = vunpack.c.h.b16 %v820
        %v832 = vunpack.c.l.b16 %v821
        %v833 = vunpack.c.h.b16 %v821
        %v834 = vpack.c.b16 %v828, %v826
        %v835 = vpack.c.b16 %v829, %v827
        %v836 = vpack.c.b16 %v832, %v830
        %v837 = vpack.c.b16 %v833, %v831
        %v843 = vsel %vm786, %v817, 0
        %845 = vmatprep.subr.bf16.mxu0 %v835
        %846 = vmatpush1.bf16.msra.mxu0 %v834
        %847 = vmatprep.subr.bf16.mxu0 %v837
        %848 = vmatpush1.bf16.msra.mxu0 %v836
        %849 = vmatprep.subr.bf16.mxu0 0
        %850 = vmatpush1.bf16.msra.mxu0 0
        %851 = vmatprep.subr.bf16.mxu0 0
        %852 = vmatpush1.bf16.msra.mxu0 0
        %853 = vmatprep.subr.bf16.mxu0 0
        %854 = vmatpush1.bf16.msra.mxu0 0
        %855 = vmatprep.subr.bf16.mxu0 0
        %856 = vmatpush1.bf16.msra.mxu0 0
        %857 = vmatprep.subr.bf16.mxu0 0
        %858 = vmatpush1.bf16.msra.mxu0 0
        %859 = vmatprep.subr.bf16.mxu0 0
        %860 = vmatpush1.bf16.msra.mxu0 0
        %861 = vmatprep.subr.bf16.mxu0 0
        %862 = vmatpush1.bf16.msra.mxu0 0
        %863 = vmatprep.subr.bf16.mxu0 0
        %864 = vmatpush1.bf16.msra.mxu0 0
        %865 = vmatprep.subr.bf16.mxu0 0
        %866 = vmatpush1.bf16.msra.mxu0 0
        %867 = vmatprep.subr.bf16.mxu0 0
        %868 = vmatpush1.bf16.msra.mxu0 0
        %869 = vmatprep.subr.bf16.mxu0 0
        %870 = vmatpush1.bf16.msra.mxu0 0
        %871 = vmatprep.subr.bf16.mxu0 0
        %872 = vmatpush1.bf16.msra.mxu0 0
        %873 = vmatprep.subr.bf16.mxu0 0
        %874 = vmatpush1.bf16.msra.mxu0 0
        %875 = vmatprep.subr.bf16.mxu0 0
        %876 = vmatpush1.bf16.msra.mxu0 0
        %877 = vmatprep.mubr.bf16.mxu0 0
        %878 = vmatmul.mubr.bf16.gmra.mrb[0].mxu0 %v843
        %v879 = vpop.f32.mrb[0].mxu0
        %v880 = vadd.f32 0.0, %v879
        %v881 = vpop.f32.mrb[0].mxu0
        %v882 = vadd.f32 0.0, %v881
        %v883 = vpop.f32.mrb[0].mxu0
        %v884 = vpop.f32.mrb[0].mxu0
        %885 = vdwg.mxu0
        %v886 = vld [vmem:[#allocation6] sm:$0xff]
        %v887 = vld [vmem:[#allocation8] sm:$0xff]
        %v888 = vmul.f32 %v882, %v886
        %890 = vrot.lane.b32.xlu0 %v887, 32
        %v891 = vpop.permute.xlu0 %890
        %v893 = vmul.f32 %v882, %v891
        %895 = vrot.lane.b32.xlu0 %v893, 96
        %v896 = vpop.permute.xlu0 %895
        %v898 = vadd.f32 %v888, %v896
        %900 = vrot.lane.b32.xlu0 %v886, 64
        %v901 = vpop.permute.xlu0 %900
        %v903 = vmul.f32 %v882, %v901
        %904 = vrot.lane.b32.xlu0 %v887, 72
        %v905 = vpop.permute.xlu0 %904
        %v907 = vmul.f32 %v882, %v905
        %909 = vrot.lane.b32.xlu0 %v907, 120
        %v910 = vpop.permute.xlu0 %909
        %v912 = vadd.f32 %v903, %v910
        %v913 = vld [vmem:[%s639] sm:$0xff]
        %915 = vrot.lane.b32.xlu0 %v912, 64
        %v916 = vpop.permute.xlu0 %915
        %v918 = vld [vmem:[%s648] sm:$0xff]
        %920 = vrot.lane.b32.xlu0 %v882, 48
        %v921 = vpop.permute.xlu0 %920
        %v923 = vld [vmem:[#allocation9] sm:$0xff]
        %vm924 = vcmask 64512
        %v926 = vsel %vm924, %v898, 0
        %v929 = vsel %vm924, %v913, 0
        %v931 = vsel %vm924, %v916, 0
        %933 = vmatprep.subr.mxu0 0.0
        %934 = vmatpush1.xpose.msra.mxu0 %v929
        %935 = vmatprep.subr.mxu0 0.0
        %936 = vmatpush1.xpose.msra.mxu0 %v931
        %937 = vmatprep.subr.mxu0 0.0
        %938 = vmatpush1.xpose.msra.mxu0 0.0
        %939 = vmatprep.subr.mxu0 0.0
        %940 = vmatpush1.xpose.msra.mxu0 0.0
        %941 = vmatprep.subr.mxu0 0.0
        %942 = vmatpush1.xpose.msra.mxu0 0.0
        %943 = vmatprep.subr.mxu0 0.0
        %944 = vmatpush1.xpose.msra.mxu0 0.0
        %945 = vmatprep.subr.mxu0 0.0
        %946 = vmatpush1.xpose.msra.mxu0 0.0
        %947 = vmatprep.subr.mxu0 0.0
        %948 = vmatpush1.xpose.msra.mxu0 0.0
        %949 = vmatprep.subr.mxu0 0.0
        %950 = vmatpush1.xpose.msra.mxu0 0.0
        %951 = vmatprep.subr.mxu0 0.0
        %952 = vmatpush1.xpose.msra.mxu0 0.0
        %953 = vmatprep.subr.mxu0 0.0
        %954 = vmatpush1.xpose.msra.mxu0 0.0
        %955 = vmatprep.subr.mxu0 0.0
        %956 = vmatpush1.xpose.msra.mxu0 0.0
        %957 = vmatprep.subr.mxu0 0.0
        %958 = vmatpush1.xpose.msra.mxu0 0.0
        %959 = vmatprep.subr.mxu0 0.0
        %960 = vmatpush1.xpose.msra.mxu0 0.0
        %961 = vmatprep.subr.mxu0 0.0
        %962 = vmatpush1.xpose.msra.mxu0 0.0
        %963 = vmatprep.subr.mxu0 0.0
        %964 = vmatpush1.xpose.msra.mxu0 0.0
        %965 = vmatprep.subr.mxu0 0.0
        %966 = vmatpush1.xpose.msra.mxu0 0.0
        %967 = vmatprep.subr.mxu0 0.0
        %968 = vmatpush1.xpose.msra.mxu0 0.0
        %969 = vmatprep.subr.mxu0 0.0
        %970 = vmatpush1.xpose.msra.mxu0 0.0
        %971 = vmatprep.subr.mxu0 0.0
        %972 = vmatpush1.xpose.msra.mxu0 0.0
        %973 = vmatprep.subr.mxu0 0.0
        %974 = vmatpush1.xpose.msra.mxu0 0.0
        %975 = vmatprep.subr.mxu0 0.0
        %976 = vmatpush1.xpose.msra.mxu0 0.0
        %977 = vmatprep.subr.mxu0 0.0
        %978 = vmatpush1.xpose.msra.mxu0 0.0
        %979 = vmatprep.subr.mxu0 0.0
        %980 = vmatpush1.xpose.msra.mxu0 0.0
        %981 = vmatprep.subr.mxu0 0.0
        %982 = vmatpush1.xpose.msra.mxu0 0.0
        %983 = vmatprep.subr.mxu0 0.0
        %984 = vmatpush1.xpose.msra.mxu0 0.0
        %985 = vmatprep.subr.mxu0 0.0
        %986 = vmatpush1.xpose.msra.mxu0 0.0
        %987 = vmatprep.subr.mxu0 0.0
        %988 = vmatpush1.xpose.msra.mxu0 0.0
        %989 = vmatprep.subr.mxu0 0.0
        %990 = vmatpush1.xpose.msra.mxu0 0.0
        %991 = vmatprep.subr.mxu0 0.0
        %992 = vmatpush1.xpose.msra.mxu0 0.0
        %993 = vmatprep.subr.mxu0 0.0
        %994 = vmatpush1.xpose.msra.mxu0 0.0
        %995 = vmatprep.subr.mxu0 0.0
        %996 = vmatpush1.xpose.msra.mxu0 0.0
        %997 = vmatprep.mubr.f32.mxu0 0.0
        %998 = vmatmul.mubr.f32.gmra.mrb[0].mxu0 %v926
        %v999 = vpop.f32.mrb[0].mxu0
        %v1000 = vadd.f32 0.0, %v999
        %v1001 = vpop.f32.mrb[0].mxu0
        %1002 = vdwg.mxu0
        %v1003 = vmul.f32 %v1000, 0.35355338
        %v1004 = vadd.f32 %v1003, %v923
        %vm1005 = vcmask 130048
        %v1006 = vsel %vm1005, %v1004, -inf
        %1007 = vmax.xlane.f32.xlu0 %v1006
        %v1008 = vpop.xlane.xlu0 %1007
        %v1009 = vsub.f32 %v1004, %v1008
        %v1010 = vmul.f32 %v1009, 1.442695
        %v1011 = vpow.pop %v1010
        %v1012 = vsel %vm1005, %v1011, 0.0
        %1013 = vadd.xlane.f32.xlu0 %v1012
        %v1014 = vpop.xlane.xlu0 %1013
        %v1015 = vrcp.pop %v1014
        %v1016 = vmul.f32 %v1011, %v1015
        %v1018 = vsel %vm1005, %v1016, 0
        %1020 = vmatprep.subr.mxu0 0.0
        %1021 = vmatpush1.msra.mxu0 %v918
        %1022 = vmatprep.subr.mxu0 0.0
        %1023 = vmatpush1.msra.mxu0 %v921
        %1024 = vmatprep.subr.mxu0 0.0
        %1025 = vmatpush1.msra.mxu0 0.0
        %1026 = vmatprep.subr.mxu0 0.0
        %1027 = vmatpush1.msra.mxu0 0.0
        %1028 = vmatprep.subr.mxu0 0.0
        %1029 = vmatpush1.msra.mxu0 0.0
        %1030 = vmatprep.subr.mxu0 0.0
        %1031 = vmatpush1.msra.mxu0 0.0
        %1032 = vmatprep.subr.mxu0 0.0
        %1033 = vmatpush1.msra.mxu0 0.0
        %1034 = vmatprep.subr.mxu0 0.0
        %1035 = vmatpush1.msra.mxu0 0.0
        %1036 = vmatprep.subr.mxu0 0.0
        %1037 = vmatpush1.msra.mxu0 0.0
        %1038 = vmatprep.subr.mxu0 0.0
        %1039 = vmatpush1.msra.mxu0 0.0
        %1040 = vmatprep.subr.mxu0 0.0
        %1041 = vmatpush1.msra.mxu0 0.0
        %1042 = vmatprep.subr.mxu0 0.0
        %1043 = vmatpush1.msra.mxu0 0.0
        %1044 = vmatprep.subr.mxu0 0.0
        %1045 = vmatpush1.msra.mxu0 0.0
        %1046 = vmatprep.subr.mxu0 0.0
        %1047 = vmatpush1.msra.mxu0 0.0
        %1048 = vmatprep.subr.mxu0 0.0
        %1049 = vmatpush1.msra.mxu0 0.0
        %1050 = vmatprep.subr.mxu0 0.0
        %1051 = vmatpush1.msra.mxu0 0.0
        %1052 = vmatprep.subr.mxu0 0.0
        %1053 = vmatpush1.msra.mxu0 0.0
        %1054 = vmatprep.subr.mxu0 0.0
        %1055 = vmatpush1.msra.mxu0 0.0
        %1056 = vmatprep.subr.mxu0 0.0
        %1057 = vmatpush1.msra.mxu0 0.0
        %1058 = vmatprep.subr.mxu0 0.0
        %1059 = vmatpush1.msra.mxu0 0.0
        %1060 = vmatprep.subr.mxu0 0.0
        %1061 = vmatpush1.msra.mxu0 0.0
        %1062 = vmatprep.subr.mxu0 0.0
        %1063 = vmatpush1.msra.mxu0 0.0
        %1064 = vmatprep.subr.mxu0 0.0
        %1065 = vmatpush1.msra.mxu0 0.0
        %1066 = vmatprep.subr.mxu0 0.0
        %1067 = vmatpush1.msra.mxu0 0.0
        %1068 = vmatprep.subr.mxu0 0.0
        %1069 = vmatpush1.msra.mxu0 0.0
        %1070 = vmatprep.subr.mxu0 0.0
        %1071 = vmatpush1.msra.mxu0 0.0
        %1072 = vmatprep.subr.mxu0 0.0
        %1073 = vmatpush1.msra.mxu0 0.0
        %1074 = vmatprep.subr.mxu0 0.0
        %1075 = vmatpush1.msra.mxu0 0.0
        %1076 = vmatprep.subr.mxu0 0.0
        %1077 = vmatpush1.msra.mxu0 0.0
        %1078 = vmatprep.subr.mxu0 0.0
        %1079 = vmatpush1.msra.mxu0 0.0
        %1080 = vmatprep.subr.mxu0 0.0
        %1081 = vmatpush1.msra.mxu0 0.0
        %1082 = vmatprep.subr.mxu0 0.0
        %1083 = vmatpush1.msra.mxu0 0.0
        %1084 = vmatprep.mubr.f32.mxu0 0.0
        %1085 = vmatmul.mubr.f32.gmra.mrb[0].mxu0 %v1018
        %v1086 = vpop.f32.mrb[0].mxu0
        %v1087 = vadd.f32 0.0, %v1086
        %v1088 = vpop.f32.mrb[0].mxu0
        %1089 = vdwg.mxu0
        %1090 = vrot.lane.b32.xlu0 %v898, 120
        %v1091 = vpop.permute.xlu0 %1090
        %v1092 = vsel %vm924, %v1091, 0
        %1094 = vmatprep.subr.mxu0 0.0
        %1095 = vmatpush1.xpose.msra.mxu0 %v929
        %1096 = vmatprep.subr.mxu0 0.0
        %1097 = vmatpush1.xpose.msra.mxu0 %v931
        %1098 = vmatprep.subr.mxu0 0.0
        %1099 = vmatpush1.xpose.msra.mxu0 0.0
        %1100 = vmatprep.subr.mxu0 0.0
        %1101 = vmatpush1.xpose.msra.mxu0 0.0
        %1102 = vmatprep.subr.mxu0 0.0
        %1103 = vmatpush1.xpose.msra.mxu0 0.0
        %1104 = vmatprep.subr.mxu0 0.0
        %1105 = vmatpush1.xpose.msra.mxu0 0.0
        %1106 = vmatprep.subr.mxu0 0.0
        %1107 = vmatpush1.xpose.msra.mxu0 0.0
        %1108 = vmatprep.subr.mxu0 0.0
        %1109 = vmatpush1.xpose.msra.mxu0 0.0
        %1110 = vmatprep.subr.mxu0 0.0
        %1111 = vmatpush1.xpose.msra.mxu0 0.0
        %1112 = vmatprep.subr.mxu0 0.0
        %1113 = vmatpush1.xpose.msra.mxu0 0.0
        %1114 = vmatprep.subr.mxu0 0.0
        %1115 = vmatpush1.xpose.msra.mxu0 0.0
        %1116 = vmatprep.subr.mxu0 0.0
        %1117 = vmatpush1.xpose.msra.mxu0 0.0
        %1118 = vmatprep.subr.mxu0 0.0
        %1119 = vmatpush1.xpose.msra.mxu0 0.0
        %1120 = vmatprep.subr.mxu0 0.0
        %1121 = vmatpush1.xpose.msra.mxu0 0.0
        %1122 = vmatprep.subr.mxu0 0.0
        %1123 = vmatpush1.xpose.msra.mxu0 0.0
        %1124 = vmatprep.subr.mxu0 0.0
        %1125 = vmatpush1.xpose.msra.mxu0 0.0
        %1126 = vmatprep.subr.mxu0 0.0
        %1127 = vmatpush1.xpose.msra.mxu0 0.0
        %1128 = vmatprep.subr.mxu0 0.0
        %1129 = vmatpush1.xpose.msra.mxu0 0.0
        %1130 = vmatprep.subr.mxu0 0.0
        %1131 = vmatpush1.xpose.msra.mxu0 0.0
        %1132 = vmatprep.subr.mxu0 0.0
        %1133 = vmatpush1.xpose.msra.mxu0 0.0
        %1134 = vmatprep.subr.mxu0 0.0
        %1135 = vmatpush1.xpose.msra.mxu0 0.0
        %1136 = vmatprep.subr.mxu0 0.0
        %1137 = vmatpush1.xpose.msra.mxu0 0.0
        %1138 = vmatprep.subr.mxu0 0.0
        %1139 = vmatpush1.xpose.msra.mxu0 0.0
        %1140 = vmatprep.subr.mxu0 0.0
        %1141 = vmatpush1.xpose.msra.mxu0 0.0
        %1142 = vmatprep.subr.mxu0 0.0
        %1143 = vmatpush1.xpose.msra.mxu0 0.0
        %1144 = vmatprep.subr.mxu0 0.0
        %1145 = vmatpush1.xpose.msra.mxu0 0.0
        %1146 = vmatprep.subr.mxu0 0.0
        %1147 = vmatpush1.xpose.msra.mxu0 0.0
        %1148 = vmatprep.subr.mxu0 0.0
        %1149 = vmatpush1.xpose.msra.mxu0 0.0
        %1150 = vmatprep.subr.mxu0 0.0
        %1151 = vmatpush1.xpose.msra.mxu0 0.0
        %1152 = vmatprep.subr.mxu0 0.0
        %1153 = vmatpush1.xpose.msra.mxu0 0.0
        %1154 = vmatprep.subr.mxu0 0.0
        %1155 = vmatpush1.xpose.msra.mxu0 0.0
        %1156 = vmatprep.subr.mxu0 0.0
        %1157 = vmatpush1.xpose.msra.mxu0 0.0
        %1158 = vmatprep.mubr.f32.mxu0 0.0
        %1159 = vmatmul.mubr.f32.gmra.mrb[0].mxu0 %v1092
        %v1160 = vpop.f32.mrb[0].mxu0
        %v1161 = vadd.f32 0.0, %v1160
        %v1162 = vpop.f32.mrb[0].mxu0
        %1163 = vdwg.mxu0
        %v1164 = vmul.f32 %v1161, 0.35355338
        %v1165 = vadd.f32 %v1164, %v923
        %v1166 = vsel %vm1005, %v1165, -inf
        %1167 = vmax.xlane.f32.xlu0 %v1166
        %v1168 = vpop.xlane.xlu0 %1167
        %v1169 = vsub.f32 %v1165, %v1168
        %v1170 = vmul.f32 %v1169, 1.442695
        %v1171 = vpow.pop %v1170
        %v1172 = vsel %vm1005, %v1171, 0.0
        %1173 = vadd.xlane.f32.xlu0 %v1172
        %v1174 = vpop.xlane.xlu0 %1173
        %v1175 = vrcp.pop %v1174
        %v1176 = vmul.f32 %v1171, %v1175
        %v1178 = vsel %vm1005, %v1176, 0
        %1180 = vmatprep.subr.mxu0 0.0
        %1181 = vmatpush1.msra.mxu0 %v918
        %1182 = vmatprep.subr.mxu0 0.0
        %1183 = vmatpush1.msra.mxu0 %v921
        %1184 = vmatprep.subr.mxu0 0.0
        %1185 = vmatpush1.msra.mxu0 0.0
        %1186 = vmatprep.subr.mxu0 0.0
        %1187 = vmatpush1.msra.mxu0 0.0
        %1188 = vmatprep.subr.mxu0 0.0
        %1189 = vmatpush1.msra.mxu0 0.0
        %1190 = vmatprep.subr.mxu0 0.0
        %1191 = vmatpush1.msra.mxu0 0.0
        %1192 = vmatprep.subr.mxu0 0.0
        %1193 = vmatpush1.msra.mxu0 0.0
        %1194 = vmatprep.subr.mxu0 0.0
        %1195 = vmatpush1.msra.mxu0 0.0
        %1196 = vmatprep.subr.mxu0 0.0
        %1197 = vmatpush1.msra.mxu0 0.0
        %1198 = vmatprep.subr.mxu0 0.0
        %1199 = vmatpush1.msra.mxu0 0.0
        %1200 = vmatprep.subr.mxu0 0.0
        %1201 = vmatpush1.msra.mxu0 0.0
        %1202 = vmatprep.subr.mxu0 0.0
        %1203 = vmatpush1.msra.mxu0 0.0
        %1204 = vmatprep.subr.mxu0 0.0
        %1205 = vmatpush1.msra.mxu0 0.0
        %1206 = vmatprep.subr.mxu0 0.0
        %1207 = vmatpush1.msra.mxu0 0.0
        %1208 = vmatprep.subr.mxu0 0.0
        %1209 = vmatpush1.msra.mxu0 0.0
        %1210 = vmatprep.subr.mxu0 0.0
        %1211 = vmatpush1.msra.mxu0 0.0
        %1212 = vmatprep.subr.mxu0 0.0
        %1213 = vmatpush1.msra.mxu0 0.0
        %1214 = vmatprep.subr.mxu0 0.0
        %1215 = vmatpush1.msra.mxu0 0.0
        %1216 = vmatprep.subr.mxu0 0.0
        %1217 = vmatpush1.msra.mxu0 0.0
        %1218 = vmatprep.subr.mxu0 0.0
        %1219 = vmatpush1.msra.mxu0 0.0
        %1220 = vmatprep.subr.mxu0 0.0
        %1221 = vmatpush1.msra.mxu0 0.0
        %1222 = vmatprep.subr.mxu0 0.0
        %1223 = vmatpush1.msra.mxu0 0.0
        %1224 = vmatprep.subr.mxu0 0.0
        %1225 = vmatpush1.msra.mxu0 0.0
        %1226 = vmatprep.subr.mxu0 0.0
        %1227 = vmatpush1.msra.mxu0 0.0
        %1228 = vmatprep.subr.mxu0 0.0
        %1229 = vmatpush1.msra.mxu0 0.0
        %1230 = vmatprep.subr.mxu0 0.0
        %1231 = vmatpush1.msra.mxu0 0.0
        %1232 = vmatprep.subr.mxu0 0.0
        %1233 = vmatpush1.msra.mxu0 0.0
        %1234 = vmatprep.subr.mxu0 0.0
        %1235 = vmatpush1.msra.mxu0 0.0
        %1236 = vmatprep.subr.mxu0 0.0
        %1237 = vmatpush1.msra.mxu0 0.0
        %1238 = vmatprep.subr.mxu0 0.0
        %1239 = vmatpush1.msra.mxu0 0.0
        %1240 = vmatprep.subr.mxu0 0.0
        %1241 = vmatpush1.msra.mxu0 0.0
        %1242 = vmatprep.subr.mxu0 0.0
        %1243 = vmatpush1.msra.mxu0 0.0
        %1244 = vmatprep.mubr.f32.mxu0 0.0
        %1245 = vmatmul.mubr.f32.gmra.mrb[0].mxu0 %v1178
        %v1246 = vpop.f32.mrb[0].mxu0
        %v1247 = vadd.f32 0.0, %v1246
        %v1248 = vpop.f32.mrb[0].mxu0
        %1249 = vdwg.mxu0
        %1250 = vrot.lane.b32.xlu0 %v898, 112
        %v1251 = vpop.permute.xlu0 %1250
        %v1252 = vsel %vm924, %v1251, 0
        %1254 = vmatprep.subr.mxu0 0.0
        %1255 = vmatpush1.xpose.msra.mxu0 %v929
        %1256 = vmatprep.subr.mxu0 0.0
        %1257 = vmatpush1.xpose.msra.mxu0 %v931
        %1258 = vmatprep.subr.mxu0 0.0
        %1259 = vmatpush1.xpose.msra.mxu0 0.0
        %1260 = vmatprep.subr.mxu0 0.0
        %1261 = vmatpush1.xpose.msra.mxu0 0.0
        %1262 = vmatprep.subr.mxu0 0.0
        %1263 = vmatpush1.xpose.msra.mxu0 0.0
        %1264 = vmatprep.subr.mxu0 0.0
        %1265 = vmatpush1.xpose.msra.mxu0 0.0
        %1266 = vmatprep.subr.mxu0 0.0
        %1267 = vmatpush1.xpose.msra.mxu0 0.0
        %1268 = vmatprep.subr.mxu0 0.0
        %1269 = vmatpush1.xpose.msra.mxu0 0.0
        %1270 = vmatprep.subr.mxu0 0.0
        %1271 = vmatpush1.xpose.msra.mxu0 0.0
        %1272 = vmatprep.subr.mxu0 0.0
        %1273 = vmatpush1.xpose.msra.mxu0 0.0
        %1274 = vmatprep.subr.mxu0 0.0
        %1275 = vmatpush1.xpose.msra.mxu0 0.0
        %1276 = vmatprep.subr.mxu0 0.0
        %1277 = vmatpush1.xpose.msra.mxu0 0.0
        %1278 = vmatprep.subr.mxu0 0.0
        %1279 = vmatpush1.xpose.msra.mxu0 0.0
        %1280 = vmatprep.subr.mxu0 0.0
        %1281 = vmatpush1.xpose.msra.mxu0 0.0
        %1282 = vmatprep.subr.mxu0 0.0
        %1283 = vmatpush1.xpose.msra.mxu0 0.0
        %1284 = vmatprep.subr.mxu0 0.0
        %1285 = vmatpush1.xpose.msra.mxu0 0.0
        %1286 = vmatprep.subr.mxu0 0.0
        %1287 = vmatpush1.xpose.msra.mxu0 0.0
        %1288 = vmatprep.subr.mxu0 0.0
        %1289 = vmatpush1.xpose.msra.mxu0 0.0
        %1290 = vmatprep.subr.mxu0 0.0
        %1291 = vmatpush1.xpose.msra.mxu0 0.0
        %1292 = vmatprep.subr.mxu0 0.0
        %1293 = vmatpush1.xpose.msra.mxu0 0.0
        %1294 = vmatprep.subr.mxu0 0.0
        %1295 = vmatpush1.xpose.msra.mxu0 0.0
        %1296 = vmatprep.subr.mxu0 0.0
        %1297 = vmatpush1.xpose.msra.mxu0 0.0
        %1298 = vmatprep.subr.mxu0 0.0
        %1299 = vmatpush1.xpose.msra.mxu0 0.0
        %1300 = vmatprep.subr.mxu0 0.0
        %1301 = vmatpush1.xpose.msra.mxu0 0.0
        %1302 = vmatprep.subr.mxu0 0.0
        %1303 = vmatpush1.xpose.msra.mxu0 0.0
        %1304 = vmatprep.subr.mxu0 0.0
        %1305 = vmatpush1.xpose.msra.mxu0 0.0
        %1306 = vmatprep.subr.mxu0 0.0
        %1307 = vmatpush1.xpose.msra.mxu0 0.0
        %1308 = vmatprep.subr.mxu0 0.0
        %1309 = vmatpush1.xpose.msra.mxu0 0.0
        %1310 = vmatprep.subr.mxu0 0.0
        %1311 = vmatpush1.xpose.msra.mxu0 0.0
        %1312 = vmatprep.subr.mxu0 0.0
        %1313 = vmatpush1.xpose.msra.mxu0 0.0
        %1314 = vmatprep.subr.mxu0 0.0
        %1315 = vmatpush1.xpose.msra.mxu0 0.0
        %1316 = vmatprep.subr.mxu0 0.0
        %1317 = vmatpush1.xpose.msra.mxu0 0.0
        %1318 = vmatprep.mubr.f32.mxu0 0.0
        %1319 = vmatmul.mubr.f32.gmra.mrb[0].mxu0 %v1252
        %v1320 = vpop.f32.mrb[0].mxu0
        %v1321 = vadd.f32 0.0, %v1320
        %v1322 = vpop.f32.mrb[0].mxu0
        %1323 = vdwg.mxu0
        %v1324 = vmul.f32 %v1321, 0.35355338
        %v1325 = vadd.f32 %v1324, %v923
        %v1326 = vsel %vm1005, %v1325, -inf
        %1327 = vmax.xlane.f32.xlu0 %v1326
        %v1328 = vpop.xlane.xlu0 %1327
        %v1329 = vsub.f32 %v1325, %v1328
        %v1330 = vmul.f32 %v1329, 1.442695
        %v1331 = vpow.pop %v1330
        %v1332 = vsel %vm1005, %v1331, 0.0
        %1333 = vadd.xlane.f32.xlu0 %v1332
        %v1334 = vpop.xlane.xlu0 %1333
        %v1335 = vrcp.pop %v1334
        %v1336 = vmul.f32 %v1331, %v1335
        %v1338 = vsel %vm1005, %v1336, 0
        %1340 = vmatprep.subr.mxu0 0.0
        %1341 = vmatpush1.msra.mxu0 %v918
        %1342 = vmatprep.subr.mxu0 0.0
        %1343 = vmatpush1.msra.mxu0 %v921
        %1344 = vmatprep.subr.mxu0 0.0
        %1345 = vmatpush1.msra.mxu0 0.0
        %1346 = vmatprep.subr.mxu0 0.0
        %1347 = vmatpush1.msra.mxu0 0.0
        %1348 = vmatprep.subr.mxu0 0.0
        %1349 = vmatpush1.msra.mxu0 0.0
        %1350 = vmatprep.subr.mxu0 0.0
        %1351 = vmatpush1.msra.mxu0 0.0
        %1352 = vmatprep.subr.mxu0 0.0
        %1353 = vmatpush1.msra.mxu0 0.0
        %1354 = vmatprep.subr.mxu0 0.0
        %1355 = vmatpush1.msra.mxu0 0.0
        %1356 = vmatprep.subr.mxu0 0.0
        %1357 = vmatpush1.msra.mxu0 0.0
        %1358 = vmatprep.subr.mxu0 0.0
        %1359 = vmatpush1.msra.mxu0 0.0
        %1360 = vmatprep.subr.mxu0 0.0
        %1361 = vmatpush1.msra.mxu0 0.0
        %1362 = vmatprep.subr.mxu0 0.0
        %1363 = vmatpush1.msra.mxu0 0.0
        %1364 = vmatprep.subr.mxu0 0.0
        %1365 = vmatpush1.msra.mxu0 0.0
        %1366 = vmatprep.subr.mxu0 0.0
        %1367 = vmatpush1.msra.mxu0 0.0
        %1368 = vmatprep.subr.mxu0 0.0
        %1369 = vmatpush1.msra.mxu0 0.0
        %1370 = vmatprep.subr.mxu0 0.0
        %1371 = vmatpush1.msra.mxu0 0.0
        %1372 = vmatprep.subr.mxu0 0.0
        %1373 = vmatpush1.msra.mxu0 0.0
        %1374 = vmatprep.subr.mxu0 0.0
        %1375 = vmatpush1.msra.mxu0 0.0
        %1376 = vmatprep.subr.mxu0 0.0
        %1377 = vmatpush1.msra.mxu0 0.0
        %1378 = vmatprep.subr.mxu0 0.0
        %1379 = vmatpush1.msra.mxu0 0.0
        %1380 = vmatprep.subr.mxu0 0.0
        %1381 = vmatpush1.msra.mxu0 0.0
        %1382 = vmatprep.subr.mxu0 0.0
        %1383 = vmatpush1.msra.mxu0 0.0
        %1384 = vmatprep.subr.mxu0 0.0
        %1385 = vmatpush1.msra.mxu0 0.0
        %1386 = vmatprep.subr.mxu0 0.0
        %1387 = vmatpush1.msra.mxu0 0.0
        %1388 = vmatprep.subr.mxu0 0.0
        %1389 = vmatpush1.msra.mxu0 0.0
        %1390 = vmatprep.subr.mxu0 0.0
        %1391 = vmatpush1.msra.mxu0 0.0
        %1392 = vmatprep.subr.mxu0 0.0
        %1393 = vmatpush1.msra.mxu0 0.0
        %1394 = vmatprep.subr.mxu0 0.0
        %1395 = vmatpush1.msra.mxu0 0.0
        %1396 = vmatprep.subr.mxu0 0.0
        %1397 = vmatpush1.msra.mxu0 0.0
        %1398 = vmatprep.subr.mxu0 0.0
        %1399 = vmatpush1.msra.mxu0 0.0
        %1400 = vmatprep.subr.mxu0 0.0
        %1401 = vmatpush1.msra.mxu0 0.0
        %1402 = vmatprep.subr.mxu0 0.0
        %1403 = vmatpush1.msra.mxu0 0.0
        %1404 = vmatprep.mubr.f32.mxu0 0.0
        %1405 = vmatmul.mubr.f32.gmra.mrb[0].mxu0 %v1338
        %v1406 = vpop.f32.mrb[0].mxu0
        %v1407 = vadd.f32 0.0, %v1406
        %v1408 = vpop.f32.mrb[0].mxu0
        %1409 = vdwg.mxu0
        %1410 = vrot.lane.b32.xlu0 %v898, 104
        %v1411 = vpop.permute.xlu0 %1410
        %v1412 = vsel %vm924, %v1411, 0
        %1414 = vmatprep.subr.mxu0 0.0
        %1415 = vmatpush1.xpose.msra.mxu0 %v929
        %1416 = vmatprep.subr.mxu0 0.0
        %1417 = vmatpush1.xpose.msra.mxu0 %v931
        %1418 = vmatprep.subr.mxu0 0.0
        %1419 = vmatpush1.xpose.msra.mxu0 0.0
        %1420 = vmatprep.subr.mxu0 0.0
        %1421 = vmatpush1.xpose.msra.mxu0 0.0
        %1422 = vmatprep.subr.mxu0 0.0
        %1423 = vmatpush1.xpose.msra.mxu0 0.0
        %1424 = vmatprep.subr.mxu0 0.0
        %1425 = vmatpush1.xpose.msra.mxu0 0.0
        %1426 = vmatprep.subr.mxu0 0.0
        %1427 = vmatpush1.xpose.msra.mxu0 0.0
        %1428 = vmatprep.subr.mxu0 0.0
        %1429 = vmatpush1.xpose.msra.mxu0 0.0
        %1430 = vmatprep.subr.mxu0 0.0
        %1431 = vmatpush1.xpose.msra.mxu0 0.0
        %1432 = vmatprep.subr.mxu0 0.0
        %1433 = vmatpush1.xpose.msra.mxu0 0.0
        %1434 = vmatprep.subr.mxu0 0.0
        %1435 = vmatpush1.xpose.msra.mxu0 0.0
        %1436 = vmatprep.subr.mxu0 0.0
        %1437 = vmatpush1.xpose.msra.mxu0 0.0
        %1438 = vmatprep.subr.mxu0 0.0
        %1439 = vmatpush1.xpose.msra.mxu0 0.0
        %1440 = vmatprep.subr.mxu0 0.0
        %1441 = vmatpush1.xpose.msra.mxu0 0.0
        %1442 = vmatprep.subr.mxu0 0.0
        %1443 = vmatpush1.xpose.msra.mxu0 0.0
        %1444 = vmatprep.subr.mxu0 0.0
        %1445 = vmatpush1.xpose.msra.mxu0 0.0
        %1446 = vmatprep.subr.mxu0 0.0
        %1447 = vmatpush1.xpose.msra.mxu0 0.0
        %1448 = vmatprep.subr.mxu0 0.0
        %1449 = vmatpush1.xpose.msra.mxu0 0.0
        %1450 = vmatprep.subr.mxu0 0.0
        %1451 = vmatpush1.xpose.msra.mxu0 0.0
        %1452 = vmatprep.subr.mxu0 0.0
        %1453 = vmatpush1.xpose.msra.mxu0 0.0
        %1454 = vmatprep.subr.mxu0 0.0
        %1455 = vmatpush1.xpose.msra.mxu0 0.0
        %1456 = vmatprep.subr.mxu0 0.0
        %1457 = vmatpush1.xpose.msra.mxu0 0.0
        %1458 = vmatprep.subr.mxu0 0.0
        %1459 = vmatpush1.xpose.msra.mxu0 0.0
        %1460 = vmatprep.subr.mxu0 0.0
        %1461 = vmatpush1.xpose.msra.mxu0 0.0
        %1462 = vmatprep.subr.mxu0 0.0
        %1463 = vmatpush1.xpose.msra.mxu0 0.0
        %1464 = vmatprep.subr.mxu0 0.0
        %1465 = vmatpush1.xpose.msra.mxu0 0.0
        %1466 = vmatprep.subr.mxu0 0.0
        %1467 = vmatpush1.xpose.msra.mxu0 0.0
        %1468 = vmatprep.subr.mxu0 0.0
        %1469 = vmatpush1.xpose.msra.mxu0 0.0
        %1470 = vmatprep.subr.mxu0 0.0
        %1471 = vmatpush1.xpose.msra.mxu0 0.0
        %1472 = vmatprep.subr.mxu0 0.0
        %1473 = vmatpush1.xpose.msra.mxu0 0.0
        %1474 = vmatprep.subr.mxu0 0.0
        %1475 = vmatpush1.xpose.msra.mxu0 0.0
        %1476 = vmatprep.subr.mxu0 0.0
        %1477 = vmatpush1.xpose.msra.mxu0 0.0
        %1478 = vmatprep.mubr.f32.mxu0 0.0
        %1479 = vmatmul.mubr.f32.gmra.mrb[0].mxu0 %v1412
        %v1480 = vpop.f32.mrb[0].mxu0
        %v1481 = vadd.f32 0.0, %v1480
        %v1482 = vpop.f32.mrb[0].mxu0
        %1483 = vdwg.mxu0
        %v1484 = vmul.f32 %v1481, 0.35355338
        %v1485 = vadd.f32 %v1484, %v923
        %v1486 = vsel %vm1005, %v1485, -inf
        %1487 = vmax.xlane.f32.xlu0 %v1486
        %v1488 = vpop.xlane.xlu0 %1487
        %v1489 = vsub.f32 %v1485, %v1488
        %v1490 = vmul.f32 %v1489, 1.442695
        %v1491 = vpow.pop %v1490
        %v1492 = vsel %vm1005, %v1491, 0.0
        %1493 = vadd.xlane.f32.xlu0 %v1492
        %v1494 = vpop.xlane.xlu0 %1493
        %v1495 = vrcp.pop %v1494
        %v1496 = vmul.f32 %v1491, %v1495
        %v1498 = vsel %vm1005, %v1496, 0
        %1500 = vmatprep.subr.mxu0 0.0
        %1501 = vmatpush1.msra.mxu0 %v918
        %1502 = vmatprep.subr.mxu0 0.0
        %1503 = vmatpush1.msra.mxu0 %v921
        %1504 = vmatprep.subr.mxu0 0.0
        %1505 = vmatpush1.msra.mxu0 0.0
        %1506 = vmatprep.subr.mxu0 0.0
        %1507 = vmatpush1.msra.mxu0 0.0
        %1508 = vmatprep.subr.mxu0 0.0
        %1509 = vmatpush1.msra.mxu0 0.0
        %1510 = vmatprep.subr.mxu0 0.0
        %1511 = vmatpush1.msra.mxu0 0.0
        %1512 = vmatprep.subr.mxu0 0.0
        %1513 = vmatpush1.msra.mxu0 0.0
        %1514 = vmatprep.subr.mxu0 0.0
        %1515 = vmatpush1.msra.mxu0 0.0
        %1516 = vmatprep.subr.mxu0 0.0
        %1517 = vmatpush1.msra.mxu0 0.0
        %1518 = vmatprep.subr.mxu0 0.0
        %1519 = vmatpush1.msra.mxu0 0.0
        %1520 = vmatprep.subr.mxu0 0.0
        %1521 = vmatpush1.msra.mxu0 0.0
        %1522 = vmatprep.subr.mxu0 0.0
        %1523 = vmatpush1.msra.mxu0 0.0
        %1524 = vmatprep.subr.mxu0 0.0
        %1525 = vmatpush1.msra.mxu0 0.0
        %1526 = vmatprep.subr.mxu0 0.0
        %1527 = vmatpush1.msra.mxu0 0.0
        %1528 = vmatprep.subr.mxu0 0.0
        %1529 = vmatpush1.msra.mxu0 0.0
        %1530 = vmatprep.subr.mxu0 0.0
        %1531 = vmatpush1.msra.mxu0 0.0
        %1532 = vmatprep.subr.mxu0 0.0
        %1533 = vmatpush1.msra.mxu0 0.0
        %1534 = vmatprep.subr.mxu0 0.0
        %1535 = vmatpush1.msra.mxu0 0.0
        %1536 = vmatprep.subr.mxu0 0.0
        %1537 = vmatpush1.msra.mxu0 0.0
        %1538 = vmatprep.subr.mxu0 0.0
        %1539 = vmatpush1.msra.mxu0 0.0
        %1540 = vmatprep.subr.mxu0 0.0
        %1541 = vmatpush1.msra.mxu0 0.0
        %1542 = vmatprep.subr.mxu0 0.0
        %1543 = vmatpush1.msra.mxu0 0.0
        %1544 = vmatprep.subr.mxu0 0.0
        %1545 = vmatpush1.msra.mxu0 0.0
        %1546 = vmatprep.subr.mxu0 0.0
        %1547 = vmatpush1.msra.mxu0 0.0
        %1548 = vmatprep.subr.mxu0 0.0
        %1549 = vmatpush1.msra.mxu0 0.0
        %1550 = vmatprep.subr.mxu0 0.0
        %1551 = vmatpush1.msra.mxu0 0.0
        %1552 = vmatprep.subr.mxu0 0.0
        %1553 = vmatpush1.msra.mxu0 0.0
        %1554 = vmatprep.subr.mxu0 0.0
        %1555 = vmatpush1.msra.mxu0 0.0
        %1556 = vmatprep.subr.mxu0 0.0
        %1557 = vmatpush1.msra.mxu0 0.0
        %1558 = vmatprep.subr.mxu0 0.0
        %1559 = vmatpush1.msra.mxu0 0.0
        %1560 = vmatprep.subr.mxu0 0.0
        %1561 = vmatpush1.msra.mxu0 0.0
        %1562 = vmatprep.subr.mxu0 0.0
        %1563 = vmatpush1.msra.mxu0 0.0
        %1564 = vmatprep.mubr.f32.mxu0 0.0
        %1565 = vmatmul.mubr.f32.gmra.mrb[0].mxu0 %v1498
        %v1566 = vpop.f32.mrb[0].mxu0
        %v1567 = vadd.f32 0.0, %v1566
        %v1568 = vpop.f32.mrb[0].mxu0
        %1569 = vdwg.mxu0
        %1571 = vrot.lane.b32.xlu0 %v1247, 8
        %v1572 = vpop.permute.xlu0 %1571
        %1575 = vrot.lane.b32.xlu0 %v1407, 16
        %v1576 = vpop.permute.xlu0 %1575
        %1579 = vrot.lane.b32.xlu0 %v1567, 24
        %v1580 = vpop.permute.xlu0 %1579
        %v1582 = vsel %vm924, %v1087, %v1572
        %v1583 = vsel %vm1005, %v1582, %v1576
        %vm1584 = vcmask 195584
        %v1585 = vsel %vm1584, %v1583, %v1580
        %v1586 = vpack.c.bf16 %v1585, %v1585
        %v1587 = vld [vmem:[%s682] sm:$0xf]
        %v1588 = vld [vmem:[%s682 + $0x4] sm:$0xf]
        %v1589 = vld [vmem:[%s682 + $0x8] sm:$0xf]
        %v1590 = vld [vmem:[%s682 + $0xc] sm:$0xf]
        %v1595 = vunpack.c.l.b16 %v1587
        %v1596 = vunpack.c.l.b16 %v1588
        %v1597 = vunpack.c.l.b16 %v1589
        %v1598 = vunpack.c.l.b16 %v1590
        %v1599 = vpack.c.b16 %v1596, %v1595
        %v1600 = vpack.c.b16 %v1598, %v1597
        %v1604 = vsel %vm786, %v1586, 0
        %1606 = vmatprep.subr.bf16.mxu0 0
        %1607 = vmatpush1.bf16.msra.mxu0 %v1599
        %1608 = vmatprep.subr.bf16.mxu0 0
        %1609 = vmatpush1.bf16.msra.mxu0 %v1600
        %1610 = vmatprep.subr.bf16.mxu0 0
        %1611 = vmatpush1.bf16.msra.mxu0 0
        %1612 = vmatprep.subr.bf16.mxu0 0
        %1613 = vmatpush1.bf16.msra.mxu0 0
        %1614 = vmatprep.subr.bf16.mxu0 0
        %1615 = vmatpush1.bf16.msra.mxu0 0
        %1616 = vmatprep.subr.bf16.mxu0 0
        %1617 = vmatpush1.bf16.msra.mxu0 0
        %1618 = vmatprep.subr.bf16.mxu0 0
        %1619 = vmatpush1.bf16.msra.mxu0 0
        %1620 = vmatprep.subr.bf16.mxu0 0
        %1621 = vmatpush1.bf16.msra.mxu0 0
        %1622 = vmatprep.subr.bf16.mxu0 0
        %1623 = vmatpush1.bf16.msra.mxu0 0
        %1624 = vmatprep.subr.bf16.mxu0 0
        %1625 = vmatpush1.bf16.msra.mxu0 0
        %1626 = vmatprep.subr.bf16.mxu0 0
        %1627 = vmatpush1.bf16.msra.mxu0 0
        %1628 = vmatprep.subr.bf16.mxu0 0
        %1629 = vmatpush1.bf16.msra.mxu0 0
        %1630 = vmatprep.subr.bf16.mxu0 0
        %1631 = vmatpush1.bf16.msra.mxu0 0
        %1632 = vmatprep.subr.bf16.mxu0 0
        %1633 = vmatpush1.bf16.msra.mxu0 0
        %1634 = vmatprep.subr.bf16.mxu0 0
        %1635 = vmatpush1.bf16.msra.mxu0 0
        %1636 = vmatprep.subr.bf16.mxu0 0
        %1637 = vmatpush1.bf16.msra.mxu0 0
        %1638 = vmatprep.mubr.bf16.mxu0 0
        %1639 = vmatmul.mubr.bf16.gmra.mrb[0].mxu0 %v1604
        %v1640 = vpop.f32.mrb[0].mxu0
        %v1641 = vadd.f32 0.0, %v1640
        %v1642 = vpop.f32.mrb[0].mxu0
        %v1643 = vpop.f32.mrb[0].mxu0
        %v1644 = vpop.f32.mrb[0].mxu0
        %1645 = vdwg.mxu0
        %v1646 = vmul.f32 %v880, 0.5
        %v1647 = vmul.f32 %v880, 0.044715
        %v1648 = vmul.f32 %v1647, %v880
        %v1649 = vmul.f32 %v1648, %v880
        %v1650 = vadd.f32 %v880, %v1649
        %v1651 = vmul.f32 %v1650, 0.7978846
        %v1652 = vtanh.pop %v1651
        %v1653 = vadd.f32 %v1652, 1.0
        %v1654 = vmul.f32 %v1646, %v1653
        %v1655 = vpack.c.bf16 %v1654, %v1654
        %v1656 = vld [vmem:[%s691] sm:$0xf]
        %v1657 = vld [vmem:[%s691 + $0x4] sm:$0xf]
        %v1658 = vld [vmem:[%s691 + $0x8] sm:$0xf]
        %v1659 = vld [vmem:[%s691 + $0xc] sm:$0xf]
        %v1660 = vld [vmem:[%s691 + $0x10] sm:$0xf]
        %v1661 = vld [vmem:[%s691 + $0x14] sm:$0xf]
        %v1662 = vld [vmem:[%s691 + $0x18] sm:$0xf]
        %v1663 = vld [vmem:[%s691 + $0x1c] sm:$0xf]
        %v1664 = vld [vmem:[%s691 + $0x20] sm:$0xf]
        %v1665 = vld [vmem:[%s691 + $0x24] sm:$0xf]
        %v1666 = vld [vmem:[%s691 + $0x28] sm:$0xf]
        %v1667 = vld [vmem:[%s691 + $0x2c] sm:$0xf]
        %v1668 = vld [vmem:[%s691 + $0x30] sm:$0xf]
        %v1669 = vld [vmem:[%s691 + $0x34] sm:$0xf]
        %v1670 = vld [vmem:[%s691 + $0x38] sm:$0xf]
        %v1671 = vld [vmem:[%s691 + $0x3c] sm:$0xf]
        %v1688 = vunpack.c.l.b16 %v1656
        %v1689 = vunpack.c.l.b16 %v1657
        %v1690 = vunpack.c.l.b16 %v1658
        %v1691 = vunpack.c.l.b16 %v1659
        %v1692 = vunpack.c.l.b16 %v1660
        %v1693 = vunpack.c.l.b16 %v1661
        %v1694 = vunpack.c.l.b16 %v1662
        %v1695 = vunpack.c.l.b16 %v1663
        %v1696 = vunpack.c.l.b16 %v1664
        %v1697 = vunpack.c.l.b16 %v1665
        %v1698 = vunpack.c.l.b16 %v1666
        %v1699 = vunpack.c.l.b16 %v1667
        %v1700 = vunpack.c.l.b16 %v1668
        %v1701 = vunpack.c.l.b16 %v1669
        %v1702 = vunpack.c.l.b16 %v1670
        %v1703 = vunpack.c.l.b16 %v1671
        %v1704 = vpack.c.b16 %v1689, %v1688
        %v1705 = vpack.c.b16 %v1691, %v1690
        %v1706 = vpack.c.b16 %v1693, %v1692
        %v1707 = vpack.c.b16 %v1695, %v1694
        %v1708 = vpack.c.b16 %v1697, %v1696
        %v1709 = vpack.c.b16 %v1699, %v1698
        %v1710 = vpack.c.b16 %v1701, %v1700
        %v1711 = vpack.c.b16 %v1703, %v1702
        %1720 = vmatprep.subr.bf16.mxu0 0
        %1721 = vmatpush1.bf16.msra.mxu0 %v1704
        %1722 = vmatprep.subr.bf16.mxu0 0
        %1723 = vmatpush1.bf16.msra.mxu0 %v1705
        %1724 = vmatprep.subr.bf16.mxu0 0
        %1725 = vmatpush1.bf16.msra.mxu0 %v1706
        %1726 = vmatprep.subr.bf16.mxu0 0
        %1727 = vmatpush1.bf16.msra.mxu0 %v1707
        %1728 = vmatprep.subr.bf16.mxu0 0
        %1729 = vmatpush1.bf16.msra.mxu0 %v1708
        %1730 = vmatprep.subr.bf16.mxu0 0
        %1731 = vmatpush1.bf16.msra.mxu0 %v1709
        %1732 = vmatprep.subr.bf16.mxu0 0
        %1733 = vmatpush1.bf16.msra.mxu0 %v1710
        %1734 = vmatprep.subr.bf16.mxu0 0
        %1735 = vmatpush1.bf16.msra.mxu0 %v1711
        %1736 = vmatprep.subr.bf16.mxu0 0
        %1737 = vmatpush1.bf16.msra.mxu0 0
        %1738 = vmatprep.subr.bf16.mxu0 0
        %1739 = vmatpush1.bf16.msra.mxu0 0
        %1740 = vmatprep.subr.bf16.mxu0 0
        %1741 = vmatpush1.bf16.msra.mxu0 0
        %1742 = vmatprep.subr.bf16.mxu0 0
        %1743 = vmatpush1.bf16.msra.mxu0 0
        %1744 = vmatprep.subr.bf16.mxu0 0
        %1745 = vmatpush1.bf16.msra.mxu0 0
        %1746 = vmatprep.subr.bf16.mxu0 0
        %1747 = vmatpush1.bf16.msra.mxu0 0
        %1748 = vmatprep.subr.bf16.mxu0 0
        %1749 = vmatpush1.bf16.msra.mxu0 0
        %1750 = vmatprep.subr.bf16.mxu0 0
        %1751 = vmatpush1.bf16.msra.mxu0 0
        %1752 = vmatprep.mubr.bf16.mxu0 0
        %1753 = vmatmul.mubr.bf16.gmra.mrb[0].mxu0 %v1655
        %v1754 = vpop.f32.mrb[0].mxu0
        %v1755 = vadd.f32 0.0, %v1754
        %v1756 = vpop.f32.mrb[0].mxu0
        %v1757 = vpop.f32.mrb[0].mxu0
        %v1758 = vpop.f32.mrb[0].mxu0
        %1759 = vdwg.mxu0
        %v1760 = vadd.f32 %v785, %v1641
        %v1761 = vadd.f32 %v1760, %v1755
        %1762 = vst.msk [vmem:[#allocation2] sm:$0xff] %vm786, %v1761
        %1763 = vst.msk [vmem:[%s769] sm:$0xff] %vm924, %v913
        %1764 = vst.msk [vmem:[%s769 + $0x8] sm:$0xff] %vm924, %v916
        %1765 = vst.msk [vmem:[%s776] sm:$0xff] %vm924, %v918
        %1766 = vst.msk [vmem:[%s776 + $0x8] sm:$0xff] %vm924, %v921
        %p1767 = scmp.eq.s32.totalorder %s41, 1
        // Predicated region
        $region113: #{tpu_custom_call.1} parent=63 // pred_check
          %p1768 = pneg %p1767
        $region114: #{tpu_custom_call.1} parent=63 // pred_check_branch
          %1770 = sbr.rel (%p1768) target = $region116
        $region115: #{tpu_custom_call.1} parent=63 // pred_region
          %1771 = vst.msk [vmem:[%s762] sm:$0xff] %vm786, %v1761
        $region116: #{tpu_custom_call.1} parent=63 // pred_fallthru
          _
        %s1772 = sand.u32 %s331, 1
        %s1773 = scalar_lea.sflag [#allocation5], %s1772
        %s1774 = sand.u32 %s331, 1
        %s1775 = smul.addr %s1774, 8
        %s1776 = scalar_lea.vmem [#allocation18], %s1775
        %s1777 = sand.u32 %s36, 1
        %s1778 = scalar_lea.sflag [#allocation20], %s1777
        %s1779 = sand.u32 %s359, 1
        %s1780 = smul.addr %s1779, 16
        %s1781 = scalar_lea.vmem [#allocation19], %s1780
        %s1782 = sand.u32 %s36, 1
        %s1783 = scalar_lea.sflag [#allocation20], %s1782
        %s1784 = sand.u32 %s387, 1
        %s1785 = smul.addr %s1784, 16
        %s1786 = scalar_lea.vmem [#allocation21], %s1785
        // Predicated region
        $region117: #{tpu_custom_call.1} parent=63 // pred_check
          %p1787 = pneg %p341
        $region118: #{tpu_custom_call.1} parent=63 // pred_check_branch
          %1789 = sbr.rel (%p1787) target = $region120
        $region119: #{tpu_custom_call.1} parent=63 // pred_region
          %s1791 = ssub.s32 128, 128
          %1792 = vsyncadd %s1773, %s1791
          %s1793 = smul.addr %s40, 128
          %s1794 = scalar_lea.hbm %s11, %s1793
          %s1796 = sshll.u32 %s1776, 4
          %s1797 = int_to_ptr.vmem [resolvable:$true] %s1796
          %1799 = dma.vmem_to_hbm [thread:$0]  %s1797, 128, %s1794, %s1773
        $region120: #{tpu_custom_call.1} parent=63 // pred_fallthru
          _
        // Predicated region
        $region121: #{tpu_custom_call.1} parent=63 // pred_check
          %p1800 = pneg %p369
        $region122: #{tpu_custom_call.1} parent=63 // pred_check_branch
          %1802 = sbr.rel (%p1800) target = $region124
        $region123: #{tpu_custom_call.1} parent=63 // pred_region
          %s1804 = ssub.s32 256, 256
          %1805 = vsyncadd %s1778, %s1804
          %s1806 = smul.addr %s40, 2
          %s1807 = smul.addr %s41, 4
          %s1808 = sadd.s32 %s1806, %s1807
          %s1809 = smul.addr %s1808, 128
          %s1810 = scalar_lea.hbm %s12, %s1809
          %s1811 = sshll.u32 %s1781, 4
          %s1812 = int_to_ptr.vmem [resolvable:$true] %s1811
          %1817 = dma.vmem_to_hbm [thread:$0]  %s1812, 256, %s1810, %s1778, 128, 128, 8
        $region124: #{tpu_custom_call.1} parent=63 // pred_fallthru
          _
        // Predicated region
        $region125: #{tpu_custom_call.1} parent=63 // pred_check
          %p1818 = pneg %p397
        $region126: #{tpu_custom_call.1} parent=63 // pred_check_branch
          %1820 = sbr.rel (%p1818) target = $region128
        $region127: #{tpu_custom_call.1} parent=63 // pred_region
          %s1822 = ssub.s32 256, 256
          %1823 = vsyncadd %s1783, %s1822
          %s1824 = smul.addr %s40, 2
          %s1825 = smul.addr %s41, 4
          %s1826 = sadd.s32 %s1824, %s1825
          %s1827 = smul.addr %s1826, 128
          %s1828 = scalar_lea.hbm %s13, %s1827
          %s1829 = sshll.u32 %s1786, 4
          %s1830 = int_to_ptr.vmem [resolvable:$true] %s1829
          %1835 = dma.vmem_to_hbm [thread:$0]  %s1830, 256, %s1828, %s1783, 128, 128, 8
        $region128: #{tpu_custom_call.1} parent=63 // pred_fallthru
          _
      $region64: #{tpu_custom_call.1} parent=5 // pred_fallthru
        _
      %p1836 = scmp.le.s32.totalorder 2, %s31
      // Predicated region
      $region129: #{tpu_custom_call.1} parent=5 // pred_check
        %p1837 = pneg %p1836
      $region130: #{tpu_custom_call.1} parent=5 // pred_check_branch
        %1839 = sbr.rel (%p1837) target = $region132
      $region131: #{tpu_custom_call.1} parent=5 // pred_region
        %s1840 = ssub.s32 %s31, 2
        // Predicated region
        $region133: #{tpu_custom_call.1} parent=131 // pred_check
          %p1841 = pneg %p347
        $region134: #{tpu_custom_call.1} parent=131 // pred_check_branch
          %1843 = sbr.rel (%p1841) target = $region136
        $region135: #{tpu_custom_call.1} parent=131 // pred_region
          %s1844 = sand.u32 %s332, 1
          %s1845 = scalar_lea.sflag [#allocation5], %s1844
          %s1846 = sand.u32 %s332, 1
          %s1847 = smul.addr %s1846, 8
          %s1848 = scalar_lea.vmem [#allocation18], %s1847
          %1849 = dma.done %s1845, 128
        $region136: #{tpu_custom_call.1} parent=131 // pred_fallthru
          _
        // Predicated region
        $region137: #{tpu_custom_call.1} parent=131 // pred_check
          %p1850 = pneg %p375
        $region138: #{tpu_custom_call.1} parent=131 // pred_check_branch
          %1852 = sbr.rel (%p1850) target = $region140
        $region139: #{tpu_custom_call.1} parent=131 // pred_region
          %s1853 = sand.u32 %s37, 1
          %s1854 = scalar_lea.sflag [#allocation20], %s1853
          %s1855 = sand.u32 %s360, 1
          %s1856 = smul.addr %s1855, 16
          %s1857 = scalar_lea.vmem [#allocation19], %s1856
          %1858 = dma.done %s1854, 256
        $region140: #{tpu_custom_call.1} parent=131 // pred_fallthru
          _
        // Predicated region
        $region141: #{tpu_custom_call.1} parent=131 // pred_check
          %p1859 = pneg %p403
        $region142: #{tpu_custom_call.1} parent=131 // pred_check_branch
          %1861 = sbr.rel (%p1859) target = $region144
        $region143: #{tpu_custom_call.1} parent=131 // pred_region
          %s1862 = sand.u32 %s37, 1
          %s1863 = scalar_lea.sflag [#allocation20], %s1862
          %s1864 = sand.u32 %s388, 1
          %s1865 = smul.addr %s1864, 16
          %s1866 = scalar_lea.vmem [#allocation21], %s1865
          %1867 = dma.done %s1863, 256
        $region144: #{tpu_custom_call.1} parent=131 // pred_fallthru
          _
      $region132: #{tpu_custom_call.1} parent=5 // pred_fallthru
        _
    $region6: #{tpu_custom_call.1} parent=1 // loop_footer
      %s35 = sadd.s32 1, %s31
    $region7: #{tpu_custom_call.1} parent=1 // loop_footer_branch
      %30 = sbr.rel target = $region3
    $region8: #{tpu_custom_call.1} parent=1 // loop_exit
      _
    %1868 = vsyncpa [#allocation4], 1
    %s1869 = scalar_lea.sflag [#allocation4], 1
    %1870 = vsyncpa %s1869, 1
    %1871 = vsyncpa [#allocation7], 1
    %1872 = vsyncpa [#allocation10], 1
    %1873 = vsyncpa [#allocation5], 1
    %s1874 = scalar_lea.sflag [#allocation5], 1
    %1875 = vsyncpa %s1874, 1
    %1876 = vsyncpa [#allocation20], 1
    %s1877 = scalar_lea.sflag [#allocation20], 1
    %1878 = vsyncpa %s1877, 1

</llo_original>
